<compile_context>
chip_gen: v7x
topology: tpu7x:2x2x1
jax: 0.10.0
libtpu: 0.0.40
codegen_flags: <defaults>
</compile_context>

<pallas_src>
import functools

import jax
import jax.numpy as jnp
from jax.experimental import pallas as pl
from jax.experimental.pallas import tpu as pltpu

INPUT_SIZE = 200
H1 = 2 * INPUT_SIZE            # 400
H2 = int(3 * INPUT_SIZE / 2)   # 300

LANE = 128


def _round_up(n, m):
    return ((n + m - 1) // m) * m


IN_P = _round_up(INPUT_SIZE, LANE)    # 256
H1_P = _round_up(H1, LANE)            # 512
H2_P = _round_up(H2, LANE)            # 384
OUT_P = _round_up(INPUT_SIZE, LANE)   # 256


def _mlp_kernel(x_ref, w1_ref, b1_ref, w2_ref, b2_ref, w3_ref, b3_ref, o_ref):
    # fc1 + ReLU : bf16 MXU matmul, f32 accumulate, f32 elementwise.
    h = jnp.dot(x_ref[...], w1_ref[...], preferred_element_type=jnp.float32)
    h = jnp.maximum(h + b1_ref[...], 0.0)
    # fc2 + ReLU
    h = jnp.dot(h.astype(jnp.bfloat16), w2_ref[...],
                preferred_element_type=jnp.float32)
    h = jnp.maximum(h + b2_ref[...], 0.0)
    # fc3 (no activation)
    out = jnp.dot(h.astype(jnp.bfloat16), w3_ref[...],
                  preferred_element_type=jnp.float32)
    o_ref[...] = (out + b3_ref[...]).astype(o_ref.dtype)


def _pad2d(a, rows, cols):
    return jnp.pad(a, ((0, rows - a.shape[0]), (0, cols - a.shape[1])))


def prepare_params(params):
    """Zero-pad to lane-aligned shapes; weights in bf16 (halves weight DMA),
    biases kept f32 so the bias-add/ReLU stays on the f32 VPU path."""
    return {
        "w1": _pad2d(params["w1"], IN_P, H1_P).astype(jnp.bfloat16),
        "b1": _pad2d(params["b1"], 1, H1_P).astype(jnp.float32),
        "w2": _pad2d(params["w2"], H1_P, H2_P).astype(jnp.bfloat16),
        "b2": _pad2d(params["b2"], 1, H2_P).astype(jnp.float32),
        "w3": _pad2d(params["w3"], H2_P, OUT_P).astype(jnp.bfloat16),
        "b3": _pad2d(params["b3"], 1, OUT_P).astype(jnp.float32),
    }


@functools.partial(jax.jit, static_argnames=("max_block_b",))
def english_hindi_net_forward(x, pparams, max_block_b=256):
    """x: (B, INPUT_SIZE) float32. pparams: output of prepare_params()."""
    B = x.shape[0]
    # Batch tile: up to 256 rows (good MXU M utilisation on v6e/v7x); at tiny
    # batch just round up to the 8-sublane granule (single grid step).
    TB = min(max_block_b, _round_up(max(B, 1), 8))
    B_pad = _round_up(B, TB)
    grid = (B_pad // TB,)

    # Pad batch + feature dims with zeros, feed the MXU bf16 activations.
    x_p = jnp.pad(x, ((0, B_pad - B), (0, IN_P - x.shape[1]))).astype(jnp.bfloat16)

    w1, b1 = pparams["w1"], pparams["b1"]
    w2, b2 = pparams["w2"], pparams["b2"]
    w3, b3 = pparams["w3"], pparams["b3"]

    # Constant block index -> weights/biases stay resident in VMEM across the
    # batch grid (not re-fetched per step).
    const = lambda shape: pl.BlockSpec(shape, lambda i: (0, 0))

    out_p = pl.pallas_call(
        _mlp_kernel,
        out_shape=jax.ShapeDtypeStruct((B_pad, OUT_P), jnp.float32),
        grid_spec=pl.GridSpec(
            grid=grid,
            in_specs=[
                pl.BlockSpec((TB, IN_P), lambda i: (i, 0)),
                const(w1.shape), const(b1.shape),
                const(w2.shape), const(b2.shape),
                const(w3.shape), const(b3.shape),
            ],
            out_specs=pl.BlockSpec((TB, OUT_P), lambda i: (i, 0)),
        ),
        compiler_params=pltpu.CompilerParams(
            dimension_semantics=("parallel",),     # megacore sharding on v7x
            vmem_limit_bytes=32 * 1024 * 1024,     # safe on v5e/v6e/v7x
        ),
    )(x_p, w1, b1, w2, b2, w3, b3)

    # Slice off batch padding and the zero-padded output columns.
    return out_p[:B, :INPUT_SIZE]


def init_params(key):
    """PyTorch nn.Linear default init: U(-1/sqrt(fan_in), 1/sqrt(fan_in)).
    Weights stored (in, out) so the kernel computes y = x @ W + b."""
    def linear(key, fan_in, fan_out):
        kw, kb = jax.random.split(key)
        bound = 1.0 / jnp.sqrt(fan_in)
        w = jax.random.uniform(kw, (fan_in, fan_out), jnp.float32, -bound, bound)
        b = jax.random.uniform(kb, (1, fan_out), jnp.float32, -bound, bound)
        return w, b

    k1, k2, k3 = jax.random.split(key, 3)
    w1, b1 = linear(k1, INPUT_SIZE, H1)
    w2, b2 = linear(k2, H1, H2)
    w3, b3 = linear(k3, H2, INPUT_SIZE)
    return {"w1": w1, "b1": b1, "w2": w2, "b2": b2, "w3": w3, "b3": b3}


def _reference(x, p):
    h = jnp.maximum(x @ p["w1"] + p["b1"], 0.0)
    h = jnp.maximum(h @ p["w2"] + p["b2"], 0.0)
    return h @ p["w3"] + p["b3"]


if __name__ == "__main__":
    key = jax.random.PRNGKey(0)
    kx, kp = jax.random.split(key)

    params = init_params(kp)
    pparams = prepare_params(params)

    # Small batch (single grid step).
    batch = 8
    x = jax.random.normal(kx, (batch, INPUT_SIZE), jnp.float32)
    out = jax.block_until_ready(english_hindi_net_forward(x, pparams))
    ref = _reference(x, params)
    assert out.shape == (batch, INPUT_SIZE), out.shape
    # bf16 weights/activations with f32 accumulation -> ~1e-2 level error vs f32.
    assert jnp.allclose(out, ref, atol=5e-2, rtol=5e-2), (
        f"mismatch vs reference, max abs err={jnp.max(jnp.abs(out - ref))}")

    # Ragged batch exercising the batch grid (TB=256, 2 grid steps, row padding).
    batch2 = 300
    x2 = jax.random.normal(jax.random.PRNGKey(1), (batch2, INPUT_SIZE), jnp.float32)
    out2 = jax.block_until_ready(english_hindi_net_forward(x2, pparams))
    ref2 = _reference(x2, params)
    assert out2.shape == (batch2, INPUT_SIZE), out2.shape
    assert jnp.allclose(out2, ref2, atol=5e-2, rtol=5e-2), (
        f"mismatch vs reference (tiled), max abs err={jnp.max(jnp.abs(out2 - ref2))}")

    print("KERNEL_OK")
</pallas_src>

<mosaic_0001>
module attributes {stable_mosaic.version = 11 : i64} {
  func.func @_mlp_kernel(%arg0: i32, %arg1: memref<8x256xbf16, #tpu.memory_space<vmem>>, %arg2: memref<256x512xbf16, #tpu.memory_space<vmem>>, %arg3: memref<1x512xf32, #tpu.memory_space<vmem>>, %arg4: memref<512x384xbf16, #tpu.memory_space<vmem>>, %arg5: memref<1x384xf32, #tpu.memory_space<vmem>>, %arg6: memref<384x256xbf16, #tpu.memory_space<vmem>>, %arg7: memref<1x256xf32, #tpu.memory_space<vmem>>, %arg8: memref<8x256xf32, #tpu.memory_space<vmem>>) attributes {dimension_semantics = [#tpu.dimension_semantics<parallel>], iteration_bounds = array<i64: 1>, scalar_prefetch = 0 : i64, scratch_operands = 0 : i64, tpu.core_type = #tpu.core_type<tc>, window_params = [{transform_indices = @transform_0, window_bounds = array<i64: 8, 256>}, {pipeline_mode = #tpu.pipeline_mode<synchronous>, transform_indices = @transform_1, window_bounds = array<i64: 256, 512>}, {pipeline_mode = #tpu.pipeline_mode<synchronous>, transform_indices = @transform_2, window_bounds = array<i64: 1, 512>}, {pipeline_mode = #tpu.pipeline_mode<synchronous>, transform_indices = @transform_3, window_bounds = array<i64: 512, 384>}, {pipeline_mode = #tpu.pipeline_mode<synchronous>, transform_indices = @transform_4, window_bounds = array<i64: 1, 384>}, {pipeline_mode = #tpu.pipeline_mode<synchronous>, transform_indices = @transform_5, window_bounds = array<i64: 384, 256>}, {pipeline_mode = #tpu.pipeline_mode<synchronous>, transform_indices = @transform_6, window_bounds = array<i64: 1, 256>}, {transform_indices = @transform_7, window_bounds = array<i64: 8, 256>}]} {
    %c0 = arith.constant 0 : index
    %c0_0 = arith.constant 0 : index
    %0 = vector.load %arg1[%c0, %c0_0] : memref<8x256xbf16, #tpu.memory_space<vmem>>, vector<8x256xbf16>
    %c0_1 = arith.constant 0 : index
    %c0_2 = arith.constant 0 : index
    %1 = vector.load %arg2[%c0_1, %c0_2] : memref<256x512xbf16, #tpu.memory_space<vmem>>, vector<256x512xbf16>
    %cst = arith.constant dense<0.000000e+00> : vector<8x512xf32>
    %2 = tpu.matmul %0, %1, %cst {dimension_numbers = #tpu.dot_dimension_numbers<[1], [0], [0], [1], [0, 0, 1, 1], [], []>} : vector<8x256xbf16>, vector<256x512xbf16>, vector<8x512xf32> -> vector<8x512xf32>
    %c0_3 = arith.constant 0 : index
    %c0_4 = arith.constant 0 : index
    %3 = vector.load %arg3[%c0_3, %c0_4] : memref<1x512xf32, #tpu.memory_space<vmem>>, vector<1x512xf32>
    %4 = vector.broadcast %3 : vector<1x512xf32> to vector<8x512xf32>
    %5 = arith.addf %2, %4 : vector<8x512xf32>
    %cst_5 = arith.constant 0.000000e+00 : f32
    %6 = vector.broadcast %cst_5 : f32 to vector<8x512xf32>
    %7 = arith.maximumf %5, %6 : vector<8x512xf32>
    %8 = arith.truncf %7 : vector<8x512xf32> to vector<8x512xbf16>
    %c0_6 = arith.constant 0 : index
    %c0_7 = arith.constant 0 : index
    %9 = vector.load %arg4[%c0_6, %c0_7] : memref<512x384xbf16, #tpu.memory_space<vmem>>, vector<512x384xbf16>
    %cst_8 = arith.constant dense<0.000000e+00> : vector<8x384xf32>
    %10 = tpu.matmul %8, %9, %cst_8 {dimension_numbers = #tpu.dot_dimension_numbers<[1], [0], [0], [1], [0, 0, 1, 1], [], []>} : vector<8x512xbf16>, vector<512x384xbf16>, vector<8x384xf32> -> vector<8x384xf32>
    %c0_9 = arith.constant 0 : index
    %c0_10 = arith.constant 0 : index
    %11 = vector.load %arg5[%c0_9, %c0_10] : memref<1x384xf32, #tpu.memory_space<vmem>>, vector<1x384xf32>
    %12 = vector.broadcast %11 : vector<1x384xf32> to vector<8x384xf32>
    %13 = arith.addf %10, %12 : vector<8x384xf32>
    %cst_11 = arith.constant 0.000000e+00 : f32
    %14 = vector.broadcast %cst_11 : f32 to vector<8x384xf32>
    %15 = arith.maximumf %13, %14 : vector<8x384xf32>
    %16 = arith.truncf %15 : vector<8x384xf32> to vector<8x384xbf16>
    %c0_12 = arith.constant 0 : index
    %c0_13 = arith.constant 0 : index
    %17 = vector.load %arg6[%c0_12, %c0_13] : memref<384x256xbf16, #tpu.memory_space<vmem>>, vector<384x256xbf16>
    %cst_14 = arith.constant dense<0.000000e+00> : vector<8x256xf32>
    %18 = tpu.matmul %16, %17, %cst_14 {dimension_numbers = #tpu.dot_dimension_numbers<[1], [0], [0], [1], [0, 0, 1, 1], [], []>} : vector<8x384xbf16>, vector<384x256xbf16>, vector<8x256xf32> -> vector<8x256xf32>
    %c0_15 = arith.constant 0 : index
    %c0_16 = arith.constant 0 : index
    %19 = vector.load %arg7[%c0_15, %c0_16] : memref<1x256xf32, #tpu.memory_space<vmem>>, vector<1x256xf32>
    %20 = vector.broadcast %19 : vector<1x256xf32> to vector<8x256xf32>
    %21 = arith.addf %18, %20 : vector<8x256xf32>
    %c0_17 = arith.constant 0 : index
    %c0_18 = arith.constant 0 : index
    %22 = vector.load %arg8[%c0_17, %c0_18] : memref<8x256xf32, #tpu.memory_space<vmem>>, vector<8x256xf32>
    tpu.vector_store %arg8[%c0_17, %c0_18], %21 {strides = array<i32>} : memref<8x256xf32, #tpu.memory_space<vmem>>, vector<8x256xf32>,
    return
  }
  func.func @transform_0(%arg0: i32) -> (i32, i32) {
    %c0_i32 = arith.constant 0 : i32
    %c0_i32_0 = arith.constant 0 : i32
    return %arg0, %c0_i32 : i32, i32
  }
  func.func @transform_1(%arg0: i32) -> (i32, i32) {
    %c0_i32 = arith.constant 0 : i32
    %c0_i32_0 = arith.constant 0 : i32
    %c0_i32_1 = arith.constant 0 : i32
    return %c0_i32, %c0_i32_0 : i32, i32
  }
  func.func @transform_2(%arg0: i32) -> (i32, i32) {
    %c0_i32 = arith.constant 0 : i32
    %c0_i32_0 = arith.constant 0 : i32
    %c0_i32_1 = arith.constant 0 : i32
    return %c0_i32, %c0_i32_0 : i32, i32
  }
  func.func @transform_3(%arg0: i32) -> (i32, i32) {
    %c0_i32 = arith.constant 0 : i32
    %c0_i32_0 = arith.constant 0 : i32
    %c0_i32_1 = arith.constant 0 : i32
    return %c0_i32, %c0_i32_0 : i32, i32
  }
  func.func @transform_4(%arg0: i32) -> (i32, i32) {
    %c0_i32 = arith.constant 0 : i32
    %c0_i32_0 = arith.constant 0 : i32
    %c0_i32_1 = arith.constant 0 : i32
    return %c0_i32, %c0_i32_0 : i32, i32
  }
  func.func @transform_5(%arg0: i32) -> (i32, i32) {
    %c0_i32 = arith.constant 0 : i32
    %c0_i32_0 = arith.constant 0 : i32
    %c0_i32_1 = arith.constant 0 : i32
    return %c0_i32, %c0_i32_0 : i32, i32
  }
  func.func @transform_6(%arg0: i32) -> (i32, i32) {
    %c0_i32 = arith.constant 0 : i32
    %c0_i32_0 = arith.constant 0 : i32
    %c0_i32_1 = arith.constant 0 : i32
    return %c0_i32, %c0_i32_0 : i32, i32
  }
  func.func @transform_7(%arg0: i32) -> (i32, i32) {
    %c0_i32 = arith.constant 0 : i32
    %c0_i32_0 = arith.constant 0 : i32
    return %arg0, %c0_i32 : i32, i32
  }
}

</mosaic_0001>

<llo_original>
// kernel: english_hindi_net_forward.1
$region0: #{english_hindi_net_forward.1}
  #allocation0 [shape = 'u32[]', space=smem, size = 0x4, offset = 0x4, fixed_abs, tag = 'smem constant byte address 0x4 - core index']
  #allocation1 [shape = 'u32[144,128]{1,0:T(1,128)}', space=vmem, size = 0x12000, scoped, tag = 'internal scratch']
  %s0 = inlined_call_operand.vmem [shape: bf16[8,256], index: 0, kind: input, shape index: {}]
  %s1 = inlined_call_operand.hbm [shape: bf16[256,512], index: 1, kind: input, shape index: {}]
  %s2 = inlined_call_operand.vmem [shape: f32[1,512], index: 2, kind: input, shape index: {}]
  %s3 = inlined_call_operand.hbm [shape: bf16[512,384], index: 3, kind: input, shape index: {}]
  %s4 = inlined_call_operand.vmem [shape: f32[1,384], index: 4, kind: input, shape index: {}]
  %s5 = inlined_call_operand.hbm [shape: bf16[384,256], index: 5, kind: input, shape index: {}]
  %s6 = inlined_call_operand.vmem [shape: f32[1,256], index: 6, kind: input, shape index: {}]
  %s7 = inlined_call_operand.hbm [shape: f32[8,256], index: 7, kind: output, shape index: {}]
  %s8 = sld [smem:[#allocation0]]
  $region50: #{english_hindi_net_forward.1} parent=0
    _
  %s10 = ssub.s32 1, %s8
  %s11 = scalar_select 0, %s10, %s8
  $region1: #{english_hindi_net_forward.1} parent=0
    #allocation2 [shape = 'u8[262144]{0}', space=vmem, size = 0x40000, scoped, tag = 'input window, operand 1, single buffered']
    #allocation3 [shape = 's32[1]{0}', space=sflag, size = 0x4, scoped, tag = 'scoped memory for english_hindi_net_forward.1']
    #allocation4 [shape = 's32[1]{0}', space=sflag, size = 0x4, scoped, tag = 'scoped memory for english_hindi_net_forward.1']
    #allocation5 [shape = 'u8[393216]{0}', space=vmem, size = 0x60000, scoped, tag = 'input window, operand 3, single buffered']
    #allocation6 [shape = 's32[1]{0}', space=sflag, size = 0x4, scoped, tag = 'scoped memory for english_hindi_net_forward.1']
    #allocation7 [shape = 'u8[196608]{0}', space=vmem, size = 0x30000, scoped, tag = 'input window, operand 5, single buffered']
    #allocation8 [shape = 'u8[8192]{0}', space=vmem, size = 0x2000, scoped, tag = 'output window, operand 0, single buffered']
    %12 = vsyncpa [#allocation3], 0
    %13 = vsyncpa [#allocation6], 0
    %14 = vsyncpa [#allocation4], 0
    // Predicated region
    $region2: #{english_hindi_net_forward.1} parent=1 // pred_check
      _
    $region3: #{english_hindi_net_forward.1} parent=1 // pred_check_branch
      %16 = sbr.rel (0) target = $region5
    $region4: #{english_hindi_net_forward.1} parent=1 // pred_region
      _
    $region5: #{english_hindi_net_forward.1} parent=1 // pred_fallthru
      _
    // Predicated region
    $region6: #{english_hindi_net_forward.1} parent=1 // pred_check
      _
    $region7: #{english_hindi_net_forward.1} parent=1 // pred_check_branch
      %18 = sbr.rel (0) target = $region9
    $region8: #{english_hindi_net_forward.1} parent=1 // pred_region
      %s20 = ssub.s32 8192, 8192
      %21 = vsyncadd [#allocation3], %s20
      %s22 = sshll.u32 [#allocation2], 4
      %s23 = int_to_ptr.vmem [resolvable:$true] %s22
      %28 = dma.hbm_to_vmem [thread:$0]  %s1, 8192, %s23, [#allocation3], 256, 256, 16
    $region9: #{english_hindi_net_forward.1} parent=1 // pred_fallthru
      _
    // Predicated region
    $region10: #{english_hindi_net_forward.1} parent=1 // pred_check
      _
    $region11: #{english_hindi_net_forward.1} parent=1 // pred_check_branch
      %30 = sbr.rel (0) target = $region13
    $region12: #{english_hindi_net_forward.1} parent=1 // pred_region
      _
    $region13: #{english_hindi_net_forward.1} parent=1 // pred_fallthru
      _
    // Predicated region
    $region14: #{english_hindi_net_forward.1} parent=1 // pred_check
      _
    $region15: #{english_hindi_net_forward.1} parent=1 // pred_check_branch
      %32 = sbr.rel (0) target = $region17
    $region16: #{english_hindi_net_forward.1} parent=1 // pred_region
      %s34 = ssub.s32 12288, 12288
      %35 = vsyncadd [#allocation6], %s34
      %s36 = sshll.u32 [#allocation5], 4
      %s37 = int_to_ptr.vmem [resolvable:$true] %s36
      %42 = dma.hbm_to_vmem [thread:$0]  %s3, 12288, %s37, [#allocation6], 192, 192, 12
    $region17: #{english_hindi_net_forward.1} parent=1 // pred_fallthru
      _
    // Predicated region
    $region18: #{english_hindi_net_forward.1} parent=1 // pred_check
      _
    $region19: #{english_hindi_net_forward.1} parent=1 // pred_check_branch
      %44 = sbr.rel (0) target = $region21
    $region20: #{english_hindi_net_forward.1} parent=1 // pred_region
      _
    $region21: #{english_hindi_net_forward.1} parent=1 // pred_fallthru
      _
    // Predicated region
    $region22: #{english_hindi_net_forward.1} parent=1 // pred_check
      _
    $region23: #{english_hindi_net_forward.1} parent=1 // pred_check_branch
      %46 = sbr.rel (0) target = $region25
    $region24: #{english_hindi_net_forward.1} parent=1 // pred_region
      %s48 = ssub.s32 6144, 6144
      %49 = vsyncadd [#allocation6], %s48
      %s50 = sshll.u32 [#allocation7], 4
      %s51 = int_to_ptr.vmem [resolvable:$true] %s50
      %56 = dma.hbm_to_vmem [thread:$0]  %s5, 6144, %s51, [#allocation6], 128, 128, 8
    $region25: #{english_hindi_net_forward.1} parent=1 // pred_fallthru
      _
    // Predicated region
    $region26: #{english_hindi_net_forward.1} parent=1 // pred_check
      _
    $region27: #{english_hindi_net_forward.1} parent=1 // pred_check_branch
      %58 = sbr.rel (0) target = $region29
    $region28: #{english_hindi_net_forward.1} parent=1 // pred_region
      _
    $region29: #{english_hindi_net_forward.1} parent=1 // pred_fallthru
      _
    // Predicated region
    $region30: #{english_hindi_net_forward.1} parent=1 // pred_check
      _
    $region31: #{english_hindi_net_forward.1} parent=1 // pred_check_branch
      %60 = sbr.rel (0) target = $region33
    $region32: #{english_hindi_net_forward.1} parent=1 // pred_region
      %61 = dma.done [#allocation3], 8192
    $region33: #{english_hindi_net_forward.1} parent=1 // pred_fallthru
      _
    // Predicated region
    $region34: #{english_hindi_net_forward.1} parent=1 // pred_check
      _
    $region35: #{english_hindi_net_forward.1} parent=1 // pred_check_branch
      %63 = sbr.rel (0) target = $region37
    $region36: #{english_hindi_net_forward.1} parent=1 // pred_region
      %64 = dma.done [#allocation6], 12288
    $region37: #{english_hindi_net_forward.1} parent=1 // pred_fallthru
      _
    // Predicated region
    $region38: #{english_hindi_net_forward.1} parent=1 // pred_check
      _
    $region39: #{english_hindi_net_forward.1} parent=1 // pred_check_branch
      %66 = sbr.rel (0) target = $region41
    $region40: #{english_hindi_net_forward.1} parent=1 // pred_region
      %67 = dma.done [#allocation6], 6144
    $region41: #{english_hindi_net_forward.1} parent=1 // pred_fallthru
      _
    %v69 = vld [vmem:[%s0] sm:$0xff]
    %v70 = vld [vmem:[#allocation2] sm:$0xff]
    %v71 = vld [vmem:[#allocation2 + $0x8] sm:$0xff]
    %v72 = vld [vmem:[#allocation2 + $0x10] sm:$0xff]
    %v73 = vld [vmem:[#allocation2 + $0x18] sm:$0xff]
    %v74 = vld [vmem:[#allocation2 + $0x20] sm:$0xff]
    %v75 = vld [vmem:[#allocation2 + $0x28] sm:$0xff]
    %v76 = vld [vmem:[#allocation2 + $0x30] sm:$0xff]
    %v77 = vld [vmem:[#allocation2 + $0x38] sm:$0xff]
    %v78 = vld [vmem:[#allocation2 + $0x40] sm:$0xff]
    %v79 = vld [vmem:[#allocation2 + $0x48] sm:$0xff]
    %v80 = vld [vmem:[#allocation2 + $0x50] sm:$0xff]
    %v81 = vld [vmem:[#allocation2 + $0x58] sm:$0xff]
    %v82 = vld [vmem:[#allocation2 + $0x60] sm:$0xff]
    %v83 = vld [vmem:[#allocation2 + $0x68] sm:$0xff]
    %v84 = vld [vmem:[#allocation2 + $0x70] sm:$0xff]
    %v85 = vld [vmem:[#allocation2 + $0x78] sm:$0xff]
    %v86 = vld [vmem:[#allocation2 + $0x80] sm:$0xff]
    %v87 = vld [vmem:[#allocation2 + $0x88] sm:$0xff]
    %v88 = vld [vmem:[#allocation2 + $0x90] sm:$0xff]
    %v89 = vld [vmem:[#allocation2 + $0x98] sm:$0xff]
    %v90 = vld [vmem:[#allocation2 + $0xa0] sm:$0xff]
    %v91 = vld [vmem:[#allocation2 + $0xa8] sm:$0xff]
    %v92 = vld [vmem:[#allocation2 + $0xb0] sm:$0xff]
    %v93 = vld [vmem:[#allocation2 + $0xb8] sm:$0xff]
    %v94 = vld [vmem:[#allocation2 + $0xc0] sm:$0xff]
    %v95 = vld [vmem:[#allocation2 + $0xc8] sm:$0xff]
    %v96 = vld [vmem:[#allocation2 + $0xd0] sm:$0xff]
    %v97 = vld [vmem:[#allocation2 + $0xd8] sm:$0xff]
    %v98 = vld [vmem:[#allocation2 + $0xe0] sm:$0xff]
    %v99 = vld [vmem:[#allocation2 + $0xe8] sm:$0xff]
    %v100 = vld [vmem:[#allocation2 + $0xf0] sm:$0xff]
    %v101 = vld [vmem:[#allocation2 + $0xf8] sm:$0xff]
    %v102 = vld [vmem:[#allocation2 + $0x100] sm:$0xff]
    %v103 = vld [vmem:[#allocation2 + $0x108] sm:$0xff]
    %v104 = vld [vmem:[#allocation2 + $0x110] sm:$0xff]
    %v105 = vld [vmem:[#allocation2 + $0x118] sm:$0xff]
    %v106 = vld [vmem:[#allocation2 + $0x120] sm:$0xff]
    %v107 = vld [vmem:[#allocation2 + $0x128] sm:$0xff]
    %v108 = vld [vmem:[#allocation2 + $0x130] sm:$0xff]
    %v109 = vld [vmem:[#allocation2 + $0x138] sm:$0xff]
    %v110 = vld [vmem:[#allocation2 + $0x140] sm:$0xff]
    %v111 = vld [vmem:[#allocation2 + $0x148] sm:$0xff]
    %v112 = vld [vmem:[#allocation2 + $0x150] sm:$0xff]
    %v113 = vld [vmem:[#allocation2 + $0x158] sm:$0xff]
    %v114 = vld [vmem:[#allocation2 + $0x160] sm:$0xff]
    %v115 = vld [vmem:[#allocation2 + $0x168] sm:$0xff]
    %v116 = vld [vmem:[#allocation2 + $0x170] sm:$0xff]
    %v117 = vld [vmem:[#allocation2 + $0x178] sm:$0xff]
    %v118 = vld [vmem:[#allocation2 + $0x180] sm:$0xff]
    %v119 = vld [vmem:[#allocation2 + $0x188] sm:$0xff]
    %v120 = vld [vmem:[#allocation2 + $0x190] sm:$0xff]
    %v121 = vld [vmem:[#allocation2 + $0x198] sm:$0xff]
    %v122 = vld [vmem:[#allocation2 + $0x1a0] sm:$0xff]
    %v123 = vld [vmem:[#allocation2 + $0x1a8] sm:$0xff]
    %v124 = vld [vmem:[#allocation2 + $0x1b0] sm:$0xff]
    %v125 = vld [vmem:[#allocation2 + $0x1b8] sm:$0xff]
    %v126 = vld [vmem:[#allocation2 + $0x1c0] sm:$0xff]
    %v127 = vld [vmem:[#allocation2 + $0x1c8] sm:$0xff]
    %v128 = vld [vmem:[#allocation2 + $0x1d0] sm:$0xff]
    %v129 = vld [vmem:[#allocation2 + $0x1d8] sm:$0xff]
    %v130 = vld [vmem:[#allocation2 + $0x1e0] sm:$0xff]
    %v131 = vld [vmem:[#allocation2 + $0x1e8] sm:$0xff]
    %v132 = vld [vmem:[#allocation2 + $0x1f0] sm:$0xff]
    %v133 = vld [vmem:[#allocation2 + $0x1f8] sm:$0xff]
    %v134 = vld [vmem:[%s2] sm:$0xf]
    %v136 = vlaneseq
    %v137 = vshrl.u32 %v136, 7
    %v138 = vsub.s32 0, %v137
    %v139 = vrot.slane %v134, %v138
    %v140 = vlaneseq
    %v141 = vshrl.u32 %v140, 7
    %v142 = vsub.s32 1, %v141
    %v143 = vrot.slane %v134, %v142
    %v144 = vlaneseq
    %v145 = vshrl.u32 %v144, 7
    %v146 = vsub.s32 2, %v145
    %v147 = vrot.slane %v134, %v146
    %v148 = vlaneseq
    %v149 = vshrl.u32 %v148, 7
    %v150 = vsub.s32 3, %v149
    %v151 = vrot.slane %v134, %v150
    %v157 = vunpack.c.l.b16 %v69
    %v158 = vunpack.c.h.b16 %v69
    %v159 = vpack.c.b16 %v157, %v157
    %v160 = vpack.c.b16 %v158, %v158
    %v227 = vunpack.c.l.b16 %v70
    %v228 = vunpack.c.h.b16 %v70
    %v229 = vunpack.c.l.b16 %v71
    %v230 = vunpack.c.h.b16 %v71
    %v231 = vunpack.c.l.b16 %v72
    %v232 = vunpack.c.h.b16 %v72
    %v233 = vunpack.c.l.b16 %v73
    %v234 = vunpack.c.h.b16 %v73
    %v235 = vunpack.c.l.b16 %v74
    %v236 = vunpack.c.h.b16 %v74
    %v237 = vunpack.c.l.b16 %v75
    %v238 = vunpack.c.h.b16 %v75
    %v239 = vunpack.c.l.b16 %v76
    %v240 = vunpack.c.h.b16 %v76
    %v241 = vunpack.c.l.b16 %v77
    %v242 = vunpack.c.h.b16 %v77
    %v243 = vunpack.c.l.b16 %v78
    %v244 = vunpack.c.h.b16 %v78
    %v245 = vunpack.c.l.b16 %v79
    %v246 = vunpack.c.h.b16 %v79
    %v247 = vunpack.c.l.b16 %v80
    %v248 = vunpack.c.h.b16 %v80
    %v249 = vunpack.c.l.b16 %v81
    %v250 = vunpack.c.h.b16 %v81
    %v251 = vunpack.c.l.b16 %v82
    %v252 = vunpack.c.h.b16 %v82
    %v253 = vunpack.c.l.b16 %v83
    %v254 = vunpack.c.h.b16 %v83
    %v255 = vunpack.c.l.b16 %v84
    %v256 = vunpack.c.h.b16 %v84
    %v257 = vunpack.c.l.b16 %v85
    %v258 = vunpack.c.h.b16 %v85
    %v259 = vunpack.c.l.b16 %v86
    %v260 = vunpack.c.h.b16 %v86
    %v261 = vunpack.c.l.b16 %v87
    %v262 = vunpack.c.h.b16 %v87
    %v263 = vunpack.c.l.b16 %v88
    %v264 = vunpack.c.h.b16 %v88
    %v265 = vunpack.c.l.b16 %v89
    %v266 = vunpack.c.h.b16 %v89
    %v267 = vunpack.c.l.b16 %v90
    %v268 = vunpack.c.h.b16 %v90
    %v269 = vunpack.c.l.b16 %v91
    %v270 = vunpack.c.h.b16 %v91
    %v271 = vunpack.c.l.b16 %v92
    %v272 = vunpack.c.h.b16 %v92
    %v273 = vunpack.c.l.b16 %v93
    %v274 = vunpack.c.h.b16 %v93
    %v275 = vunpack.c.l.b16 %v94
    %v276 = vunpack.c.h.b16 %v94
    %v277 = vunpack.c.l.b16 %v95
    %v278 = vunpack.c.h.b16 %v95
    %v279 = vunpack.c.l.b16 %v96
    %v280 = vunpack.c.h.b16 %v96
    %v281 = vunpack.c.l.b16 %v97
    %v282 = vunpack.c.h.b16 %v97
    %v283 = vunpack.c.l.b16 %v98
    %v284 = vunpack.c.h.b16 %v98
    %v285 = vunpack.c.l.b16 %v99
    %v286 = vunpack.c.h.b16 %v99
    %v287 = vunpack.c.l.b16 %v100
    %v288 = vunpack.c.h.b16 %v100
    %v289 = vunpack.c.l.b16 %v101
    %v290 = vunpack.c.h.b16 %v101
    %v291 = vunpack.c.l.b16 %v102
    %v292 = vunpack.c.h.b16 %v102
    %v293 = vunpack.c.l.b16 %v103
    %v294 = vunpack.c.h.b16 %v103
    %v295 = vunpack.c.l.b16 %v104
    %v296 = vunpack.c.h.b16 %v104
    %v297 = vunpack.c.l.b16 %v105
    %v298 = vunpack.c.h.b16 %v105
    %v299 = vunpack.c.l.b16 %v106
    %v300 = vunpack.c.h.b16 %v106
    %v301 = vunpack.c.l.b16 %v107
    %v302 = vunpack.c.h.b16 %v107
    %v303 = vunpack.c.l.b16 %v108
    %v304 = vunpack.c.h.b16 %v108
    %v305 = vunpack.c.l.b16 %v109
    %v306 = vunpack.c.h.b16 %v109
    %v307 = vunpack.c.l.b16 %v110
    %v308 = vunpack.c.h.b16 %v110
    %v309 = vunpack.c.l.b16 %v111
    %v310 = vunpack.c.h.b16 %v111
    %v311 = vunpack.c.l.b16 %v112
    %v312 = vunpack.c.h.b16 %v112
    %v313 = vunpack.c.l.b16 %v113
    %v314 = vunpack.c.h.b16 %v113
    %v315 = vunpack.c.l.b16 %v114
    %v316 = vunpack.c.h.b16 %v114
    %v317 = vunpack.c.l.b16 %v115
    %v318 = vunpack.c.h.b16 %v115
    %v319 = vunpack.c.l.b16 %v116
    %v320 = vunpack.c.h.b16 %v116
    %v321 = vunpack.c.l.b16 %v117
    %v322 = vunpack.c.h.b16 %v117
    %v323 = vunpack.c.l.b16 %v118
    %v324 = vunpack.c.h.b16 %v118
    %v325 = vunpack.c.l.b16 %v119
    %v326 = vunpack.c.h.b16 %v119
    %v327 = vunpack.c.l.b16 %v120
    %v328 = vunpack.c.h.b16 %v120
    %v329 = vunpack.c.l.b16 %v121
    %v330 = vunpack.c.h.b16 %v121
    %v331 = vunpack.c.l.b16 %v122
    %v332 = vunpack.c.h.b16 %v122
    %v333 = vunpack.c.l.b16 %v123
    %v334 = vunpack.c.h.b16 %v123
    %v335 = vunpack.c.l.b16 %v124
    %v336 = vunpack.c.h.b16 %v124
    %v337 = vunpack.c.l.b16 %v125
    %v338 = vunpack.c.h.b16 %v125
    %v339 = vunpack.c.l.b16 %v126
    %v340 = vunpack.c.h.b16 %v126
    %v341 = vunpack.c.l.b16 %v127
    %v342 = vunpack.c.h.b16 %v127
    %v343 = vunpack.c.l.b16 %v128
    %v344 = vunpack.c.h.b16 %v128
    %v345 = vunpack.c.l.b16 %v129
    %v346 = vunpack.c.h.b16 %v129
    %v347 = vunpack.c.l.b16 %v130
    %v348 = vunpack.c.h.b16 %v130
    %v349 = vunpack.c.l.b16 %v131
    %v350 = vunpack.c.h.b16 %v131
    %v351 = vunpack.c.l.b16 %v132
    %v352 = vunpack.c.h.b16 %v132
    %v353 = vunpack.c.l.b16 %v133
    %v354 = vunpack.c.h.b16 %v133
    %v355 = vpack.c.b16 %v231, %v227
    %v356 = vpack.c.b16 %v232, %v228
    %v357 = vpack.c.b16 %v233, %v229
    %v358 = vpack.c.b16 %v234, %v230
    %v359 = vpack.c.b16 %v239, %v235
    %v360 = vpack.c.b16 %v240, %v236
    %v361 = vpack.c.b16 %v241, %v237
    %v362 = vpack.c.b16 %v242, %v238
    %v363 = vpack.c.b16 %v247, %v243
    %v364 = vpack.c.b16 %v248, %v244
    %v365 = vpack.c.b16 %v249, %v245
    %v366 = vpack.c.b16 %v250, %v246
    %v367 = vpack.c.b16 %v255, %v251
    %v368 = vpack.c.b16 %v256, %v252
    %v369 = vpack.c.b16 %v257, %v253
    %v370 = vpack.c.b16 %v258, %v254
    %v371 = vpack.c.b16 %v263, %v259
    %v372 = vpack.c.b16 %v264, %v260
    %v373 = vpack.c.b16 %v265, %v261
    %v374 = vpack.c.b16 %v266, %v262
    %v375 = vpack.c.b16 %v271, %v267
    %v376 = vpack.c.b16 %v272, %v268
    %v377 = vpack.c.b16 %v273, %v269
    %v378 = vpack.c.b16 %v274, %v270
    %v379 = vpack.c.b16 %v279, %v275
    %v380 = vpack.c.b16 %v280, %v276
    %v381 = vpack.c.b16 %v281, %v277
    %v382 = vpack.c.b16 %v282, %v278
    %v383 = vpack.c.b16 %v287, %v283
    %v384 = vpack.c.b16 %v288, %v284
    %v385 = vpack.c.b16 %v289, %v285
    %v386 = vpack.c.b16 %v290, %v286
    %v387 = vpack.c.b16 %v295, %v291
    %v388 = vpack.c.b16 %v296, %v292
    %v389 = vpack.c.b16 %v297, %v293
    %v390 = vpack.c.b16 %v298, %v294
    %v391 = vpack.c.b16 %v303, %v299
    %v392 = vpack.c.b16 %v304, %v300
    %v393 = vpack.c.b16 %v305, %v301
    %v394 = vpack.c.b16 %v306, %v302
    %v395 = vpack.c.b16 %v311, %v307
    %v396 = vpack.c.b16 %v312, %v308
    %v397 = vpack.c.b16 %v313, %v309
    %v398 = vpack.c.b16 %v314, %v310
    %v399 = vpack.c.b16 %v319, %v315
    %v400 = vpack.c.b16 %v320, %v316
    %v401 = vpack.c.b16 %v321, %v317
    %v402 = vpack.c.b16 %v322, %v318
    %v403 = vpack.c.b16 %v327, %v323
    %v404 = vpack.c.b16 %v328, %v324
    %v405 = vpack.c.b16 %v329, %v325
    %v406 = vpack.c.b16 %v330, %v326
    %v407 = vpack.c.b16 %v335, %v331
    %v408 = vpack.c.b16 %v336, %v332
    %v409 = vpack.c.b16 %v337, %v333
    %v410 = vpack.c.b16 %v338, %v334
    %v411 = vpack.c.b16 %v343, %v339
    %v412 = vpack.c.b16 %v344, %v340
    %v413 = vpack.c.b16 %v345, %v341
    %v414 = vpack.c.b16 %v346, %v342
    %v415 = vpack.c.b16 %v351, %v347
    %v416 = vpack.c.b16 %v352, %v348
    %v417 = vpack.c.b16 %v353, %v349
    %v418 = vpack.c.b16 %v354, %v350
    %483 = vmatprep.subr.bf16.mxu0 %v356
    %484 = vmatpush1.bf16.msra.mxu0 %v355
    %485 = vmatprep.subr.bf16.mxu0 %v360
    %486 = vmatpush1.bf16.msra.mxu0 %v359
    %487 = vmatprep.subr.bf16.mxu0 %v364
    %488 = vmatpush1.bf16.msra.mxu0 %v363
    %489 = vmatprep.subr.bf16.mxu0 %v368
    %490 = vmatpush1.bf16.msra.mxu0 %v367
    %491 = vmatprep.subr.bf16.mxu0 %v372
    %492 = vmatpush1.bf16.msra.mxu0 %v371
    %493 = vmatprep.subr.bf16.mxu0 %v376
    %494 = vmatpush1.bf16.msra.mxu0 %v375
    %495 = vmatprep.subr.bf16.mxu0 %v380
    %496 = vmatpush1.bf16.msra.mxu0 %v379
    %497 = vmatprep.subr.bf16.mxu0 %v384
    %498 = vmatpush1.bf16.msra.mxu0 %v383
    %499 = vmatprep.subr.bf16.mxu0 %v388
    %500 = vmatpush1.bf16.msra.mxu0 %v387
    %501 = vmatprep.subr.bf16.mxu0 %v392
    %502 = vmatpush1.bf16.msra.mxu0 %v391
    %503 = vmatprep.subr.bf16.mxu0 %v396
    %504 = vmatpush1.bf16.msra.mxu0 %v395
    %505 = vmatprep.subr.bf16.mxu0 %v400
    %506 = vmatpush1.bf16.msra.mxu0 %v399
    %507 = vmatprep.subr.bf16.mxu0 %v404
    %508 = vmatpush1.bf16.msra.mxu0 %v403
    %509 = vmatprep.subr.bf16.mxu0 %v408
    %510 = vmatpush1.bf16.msra.mxu0 %v407
    %511 = vmatprep.subr.bf16.mxu0 %v412
    %512 = vmatpush1.bf16.msra.mxu0 %v411
    %513 = vmatprep.subr.bf16.mxu0 %v416
    %514 = vmatpush1.bf16.msra.mxu0 %v415
    %515 = vmatprep.mubr.bf16.mxu0 %v160
    %516 = vmatmul.mubr.bf16.gmra.mrb[0].mxu0 %v159
    %v517 = vpop.f32.mrb[0].mxu0
    %v518 = vadd.f32 %v139, %v517
    %v519 = vpop.f32.mrb[0].mxu0
    %v520 = vadd.f32 %v143, %v519
    %v521 = vpop.f32.mrb[0].mxu0
    %v522 = vpop.f32.mrb[0].mxu0
    %523 = vdwg.mxu0
    %524 = vmatprep.subr.bf16.mxu0 %v358
    %525 = vmatpush1.bf16.msra.mxu0 %v357
    %526 = vmatprep.subr.bf16.mxu0 %v362
    %527 = vmatpush1.bf16.msra.mxu0 %v361
    %528 = vmatprep.subr.bf16.mxu0 %v366
    %529 = vmatpush1.bf16.msra.mxu0 %v365
    %530 = vmatprep.subr.bf16.mxu0 %v370
    %531 = vmatpush1.bf16.msra.mxu0 %v369
    %532 = vmatprep.subr.bf16.mxu0 %v374
    %533 = vmatpush1.bf16.msra.mxu0 %v373
    %534 = vmatprep.subr.bf16.mxu0 %v378
    %535 = vmatpush1.bf16.msra.mxu0 %v377
    %536 = vmatprep.subr.bf16.mxu0 %v382
    %537 = vmatpush1.bf16.msra.mxu0 %v381
    %538 = vmatprep.subr.bf16.mxu0 %v386
    %539 = vmatpush1.bf16.msra.mxu0 %v385
    %540 = vmatprep.subr.bf16.mxu0 %v390
    %541 = vmatpush1.bf16.msra.mxu0 %v389
    %542 = vmatprep.subr.bf16.mxu0 %v394
    %543 = vmatpush1.bf16.msra.mxu0 %v393
    %544 = vmatprep.subr.bf16.mxu0 %v398
    %545 = vmatpush1.bf16.msra.mxu0 %v397
    %546 = vmatprep.subr.bf16.mxu0 %v402
    %547 = vmatpush1.bf16.msra.mxu0 %v401
    %548 = vmatprep.subr.bf16.mxu0 %v406
    %549 = vmatpush1.bf16.msra.mxu0 %v405
    %550 = vmatprep.subr.bf16.mxu0 %v410
    %551 = vmatpush1.bf16.msra.mxu0 %v409
    %552 = vmatprep.subr.bf16.mxu0 %v414
    %553 = vmatpush1.bf16.msra.mxu0 %v413
    %554 = vmatprep.subr.bf16.mxu0 %v418
    %555 = vmatpush1.bf16.msra.mxu0 %v417
    %556 = vmatprep.mubr.bf16.mxu0 %v160
    %557 = vmatmul.mubr.bf16.gmra.mrb[0].mxu0 %v159
    %v558 = vpop.f32.mrb[0].mxu0
    %v559 = vadd.f32 %v147, %v558
    %v560 = vpop.f32.mrb[0].mxu0
    %v561 = vadd.f32 %v151, %v560
    %v562 = vpop.f32.mrb[0].mxu0
    %v563 = vpop.f32.mrb[0].mxu0
    %564 = vdwg.mxu0
    %v565 = vmax.f32 %v518, 0.0
    %v566 = vmax.f32 %v520, 0.0
    %v567 = vmax.f32 %v559, 0.0
    %v568 = vmax.f32 %v561, 0.0
    %v569 = vpack.c.bf16 %v565, %v565
    %v570 = vpack.c.bf16 %v566, %v566
    %v571 = vpack.c.bf16 %v567, %v567
    %v572 = vpack.c.bf16 %v568, %v568
    %v573 = vld [vmem:[#allocation5] sm:$0xff]
    %v574 = vld [vmem:[#allocation5 + $0x8] sm:$0xf]
    %v575 = vld [vmem:[#allocation5 + $0xc] sm:$0xff]
    %v576 = vld [vmem:[#allocation5 + $0x14] sm:$0xf]
    %v577 = vld [vmem:[#allocation5 + $0x18] sm:$0xff]
    %v578 = vld [vmem:[#allocation5 + $0x20] sm:$0xf]
    %v579 = vld [vmem:[#allocation5 + $0x24] sm:$0xff]
    %v580 = vld [vmem:[#allocation5 + $0x2c] sm:$0xf]
    %v581 = vld [vmem:[#allocation5 + $0x30] sm:$0xff]
    %v582 = vld [vmem:[#allocation5 + $0x38] sm:$0xf]
    %v583 = vld [vmem:[#allocation5 + $0x3c] sm:$0xff]
    %v584 = vld [vmem:[#allocation5 + $0x44] sm:$0xf]
    %v585 = vld [vmem:[#allocation5 + $0x48] sm:$0xff]
    %v586 = vld [vmem:[#allocation5 + $0x50] sm:$0xf]
    %v587 = vld [vmem:[#allocation5 + $0x54] sm:$0xff]
    %v588 = vld [vmem:[#allocation5 + $0x5c] sm:$0xf]
    %v589 = vld [vmem:[#allocation5 + $0x60] sm:$0xff]
    %v590 = vld [vmem:[#allocation5 + $0x68] sm:$0xf]
    %v591 = vld [vmem:[#allocation5 + $0x6c] sm:$0xff]
    %v592 = vld [vmem:[#allocation5 + $0x74] sm:$0xf]
    %v593 = vld [vmem:[#allocation5 + $0x78] sm:$0xff]
    %v594 = vld [vmem:[#allocation5 + $0x80] sm:$0xf]
    %v595 = vld [vmem:[#allocation5 + $0x84] sm:$0xff]
    %v596 = vld [vmem:[#allocation5 + $0x8c] sm:$0xf]
    %v597 = vld [vmem:[#allocation5 + $0x90] sm:$0xff]
    %v598 = vld [vmem:[#allocation5 + $0x98] sm:$0xf]
    %v599 = vld [vmem:[#allocation5 + $0x9c] sm:$0xff]
    %v600 = vld [vmem:[#allocation5 + $0xa4] sm:$0xf]
    %v601 = vld [vmem:[#allocation5 + $0xa8] sm:$0xff]
    %v602 = vld [vmem:[#allocation5 + $0xb0] sm:$0xf]
    %v603 = vld [vmem:[#allocation5 + $0xb4] sm:$0xff]
    %v604 = vld [vmem:[#allocation5 + $0xbc] sm:$0xf]
    %v605 = vld [vmem:[#allocation5 + $0xc0] sm:$0xff]
    %v606 = vld [vmem:[#allocation5 + $0xc8] sm:$0xf]
    %v607 = vld [vmem:[#allocation5 + $0xcc] sm:$0xff]
    %v608 = vld [vmem:[#allocation5 + $0xd4] sm:$0xf]
    %v609 = vld [vmem:[#allocation5 + $0xd8] sm:$0xff]
    %v610 = vld [vmem:[#allocation5 + $0xe0] sm:$0xf]
    %v611 = vld [vmem:[#allocation5 + $0xe4] sm:$0xff]
    %v612 = vld [vmem:[#allocation5 + $0xec] sm:$0xf]
    %v613 = vld [vmem:[#allocation5 + $0xf0] sm:$0xff]
    %v614 = vld [vmem:[#allocation5 + $0xf8] sm:$0xf]
    %v615 = vld [vmem:[#allocation5 + $0xfc] sm:$0xff]
    %v616 = vld [vmem:[#allocation5 + $0x104] sm:$0xf]
    %v617 = vld [vmem:[#allocation5 + $0x108] sm:$0xff]
    %v618 = vld [vmem:[#allocation5 + $0x110] sm:$0xf]
    %v619 = vld [vmem:[#allocation5 + $0x114] sm:$0xff]
    %v620 = vld [vmem:[#allocation5 + $0x11c] sm:$0xf]
    %v621 = vld [vmem:[#allocation5 + $0x120] sm:$0xff]
    %v622 = vld [vmem:[#allocation5 + $0x128] sm:$0xf]
    %v623 = vld [vmem:[#allocation5 + $0x12c] sm:$0xff]
    %v624 = vld [vmem:[#allocation5 + $0x134] sm:$0xf]
    %v625 = vld [vmem:[#allocation5 + $0x138] sm:$0xff]
    %v626 = vld [vmem:[#allocation5 + $0x140] sm:$0xf]
    %v627 = vld [vmem:[#allocation5 + $0x144] sm:$0xff]
    %v628 = vld [vmem:[#allocation5 + $0x14c] sm:$0xf]
    %v629 = vld [vmem:[#allocation5 + $0x150] sm:$0xff]
    %v630 = vld [vmem:[#allocation5 + $0x158] sm:$0xf]
    %v631 = vld [vmem:[#allocation5 + $0x15c] sm:$0xff]
    %v632 = vld [vmem:[#allocation5 + $0x164] sm:$0xf]
    %v633 = vld [vmem:[#allocation5 + $0x168] sm:$0xff]
    %v634 = vld [vmem:[#allocation5 + $0x170] sm:$0xf]
    %v635 = vld [vmem:[#allocation5 + $0x174] sm:$0xff]
    %v636 = vld [vmem:[#allocation5 + $0x17c] sm:$0xf]
    %v637 = vld [vmem:[#allocation5 + $0x180] sm:$0xff]
    %v638 = vld [vmem:[#allocation5 + $0x188] sm:$0xf]
    %v639 = vld [vmem:[#allocation5 + $0x18c] sm:$0xff]
    %v640 = vld [vmem:[#allocation5 + $0x194] sm:$0xf]
    %v641 = vld [vmem:[#allocation5 + $0x198] sm:$0xff]
    %v642 = vld [vmem:[#allocation5 + $0x1a0] sm:$0xf]
    %v643 = vld [vmem:[#allocation5 + $0x1a4] sm:$0xff]
    %v644 = vld [vmem:[#allocation5 + $0x1ac] sm:$0xf]
    %v645 = vld [vmem:[#allocation5 + $0x1b0] sm:$0xff]
    %v646 = vld [vmem:[#allocation5 + $0x1b8] sm:$0xf]
    %v647 = vld [vmem:[#allocation5 + $0x1bc] sm:$0xff]
    %v648 = vld [vmem:[#allocation5 + $0x1c4] sm:$0xf]
    %v649 = vld [vmem:[#allocation5 + $0x1c8] sm:$0xff]
    %v650 = vld [vmem:[#allocation5 + $0x1d0] sm:$0xf]
    %v651 = vld [vmem:[#allocation5 + $0x1d4] sm:$0xff]
    %v652 = vld [vmem:[#allocation5 + $0x1dc] sm:$0xf]
    %v653 = vld [vmem:[#allocation5 + $0x1e0] sm:$0xff]
    %v654 = vld [vmem:[#allocation5 + $0x1e8] sm:$0xf]
    %v655 = vld [vmem:[#allocation5 + $0x1ec] sm:$0xff]
    %v656 = vld [vmem:[#allocation5 + $0x1f4] sm:$0xf]
    %v657 = vld [vmem:[#allocation5 + $0x1f8] sm:$0xff]
    %v658 = vld [vmem:[#allocation5 + $0x200] sm:$0xf]
    %v659 = vld [vmem:[#allocation5 + $0x204] sm:$0xff]
    %v660 = vld [vmem:[#allocation5 + $0x20c] sm:$0xf]
    %v661 = vld [vmem:[#allocation5 + $0x210] sm:$0xff]
    %v662 = vld [vmem:[#allocation5 + $0x218] sm:$0xf]
    %v663 = vld [vmem:[#allocation5 + $0x21c] sm:$0xff]
    %v664 = vld [vmem:[#allocation5 + $0x224] sm:$0xf]
    %v665 = vld [vmem:[#allocation5 + $0x228] sm:$0xff]
    %v666 = vld [vmem:[#allocation5 + $0x230] sm:$0xf]
    %v667 = vld [vmem:[#allocation5 + $0x234] sm:$0xff]
    %v668 = vld [vmem:[#allocation5 + $0x23c] sm:$0xf]
    %v669 = vld [vmem:[#allocation5 + $0x240] sm:$0xff]
    %v670 = vld [vmem:[#allocation5 + $0x248] sm:$0xf]
    %v671 = vld [vmem:[#allocation5 + $0x24c] sm:$0xff]
    %v672 = vld [vmem:[#allocation5 + $0x254] sm:$0xf]
    %v673 = vld [vmem:[#allocation5 + $0x258] sm:$0xff]
    %v674 = vld [vmem:[#allocation5 + $0x260] sm:$0xf]
    %v675 = vld [vmem:[#allocation5 + $0x264] sm:$0xff]
    %v676 = vld [vmem:[#allocation5 + $0x26c] sm:$0xf]
    %v677 = vld [vmem:[#allocation5 + $0x270] sm:$0xff]
    %v678 = vld [vmem:[#allocation5 + $0x278] sm:$0xf]
    %v679 = vld [vmem:[#allocation5 + $0x27c] sm:$0xff]
    %v680 = vld [vmem:[#allocation5 + $0x284] sm:$0xf]
    %v681 = vld [vmem:[#allocation5 + $0x288] sm:$0xff]
    %v682 = vld [vmem:[#allocation5 + $0x290] sm:$0xf]
    %v683 = vld [vmem:[#allocation5 + $0x294] sm:$0xff]
    %v684 = vld [vmem:[#allocation5 + $0x29c] sm:$0xf]
    %v685 = vld [vmem:[#allocation5 + $0x2a0] sm:$0xff]
    %v686 = vld [vmem:[#allocation5 + $0x2a8] sm:$0xf]
    %v687 = vld [vmem:[#allocation5 + $0x2ac] sm:$0xff]
    %v688 = vld [vmem:[#allocation5 + $0x2b4] sm:$0xf]
    %v689 = vld [vmem:[#allocation5 + $0x2b8] sm:$0xff]
    %v690 = vld [vmem:[#allocation5 + $0x2c0] sm:$0xf]
    %v691 = vld [vmem:[#allocation5 + $0x2c4] sm:$0xff]
    %v692 = vld [vmem:[#allocation5 + $0x2cc] sm:$0xf]
    %v693 = vld [vmem:[#allocation5 + $0x2d0] sm:$0xff]
    %v694 = vld [vmem:[#allocation5 + $0x2d8] sm:$0xf]
    %v695 = vld [vmem:[#allocation5 + $0x2dc] sm:$0xff]
    %v696 = vld [vmem:[#allocation5 + $0x2e4] sm:$0xf]
    %v697 = vld [vmem:[#allocation5 + $0x2e8] sm:$0xff]
    %v698 = vld [vmem:[#allocation5 + $0x2f0] sm:$0xf]
    %v699 = vld [vmem:[#allocation5 + $0x2f4] sm:$0xff]
    %v700 = vld [vmem:[#allocation5 + $0x2fc] sm:$0xf]
    %v701 = vld [vmem:[%s4] sm:$0x7]
    %v703 = vlaneseq
    %v704 = vshrl.u32 %v703, 7
    %v705 = vsub.s32 0, %v704
    %v706 = vrot.slane %v701, %v705
    %v707 = vlaneseq
    %v708 = vshrl.u32 %v707, 7
    %v709 = vsub.s32 1, %v708
    %v710 = vrot.slane %v701, %v709
    %v711 = vlaneseq
    %v712 = vshrl.u32 %v711, 7
    %v713 = vsub.s32 2, %v712
    %v714 = vrot.slane %v701, %v713
    %v846 = vunpack.c.l.b16 %v573
    %v847 = vunpack.c.h.b16 %v573
    %v848 = vunpack.c.l.b16 %v574
    %v849 = vunpack.c.l.b16 %v575
    %v850 = vunpack.c.h.b16 %v575
    %v851 = vunpack.c.l.b16 %v576
    %v852 = vunpack.c.l.b16 %v577
    %v853 = vunpack.c.h.b16 %v577
    %v854 = vunpack.c.l.b16 %v578
    %v855 = vunpack.c.l.b16 %v579
    %v856 = vunpack.c.h.b16 %v579
    %v857 = vunpack.c.l.b16 %v580
    %v858 = vunpack.c.l.b16 %v581
    %v859 = vunpack.c.h.b16 %v581
    %v860 = vunpack.c.l.b16 %v582
    %v861 = vunpack.c.l.b16 %v583
    %v862 = vunpack.c.h.b16 %v583
    %v863 = vunpack.c.l.b16 %v584
    %v864 = vunpack.c.l.b16 %v585
    %v865 = vunpack.c.h.b16 %v585
    %v866 = vunpack.c.l.b16 %v586
    %v867 = vunpack.c.l.b16 %v587
    %v868 = vunpack.c.h.b16 %v587
    %v869 = vunpack.c.l.b16 %v588
    %v870 = vunpack.c.l.b16 %v589
    %v871 = vunpack.c.h.b16 %v589
    %v872 = vunpack.c.l.b16 %v590
    %v873 = vunpack.c.l.b16 %v591
    %v874 = vunpack.c.h.b16 %v591
    %v875 = vunpack.c.l.b16 %v592
    %v876 = vunpack.c.l.b16 %v593
    %v877 = vunpack.c.h.b16 %v593
    %v878 = vunpack.c.l.b16 %v594
    %v879 = vunpack.c.l.b16 %v595
    %v880 = vunpack.c.h.b16 %v595
    %v881 = vunpack.c.l.b16 %v596
    %v882 = vunpack.c.l.b16 %v597
    %v883 = vunpack.c.h.b16 %v597
    %v884 = vunpack.c.l.b16 %v598
    %v885 = vunpack.c.l.b16 %v599
    %v886 = vunpack.c.h.b16 %v599
    %v887 = vunpack.c.l.b16 %v600
    %v888 = vunpack.c.l.b16 %v601
    %v889 = vunpack.c.h.b16 %v601
    %v890 = vunpack.c.l.b16 %v602
    %v891 = vunpack.c.l.b16 %v603
    %v892 = vunpack.c.h.b16 %v603
    %v893 = vunpack.c.l.b16 %v604
    %v894 = vunpack.c.l.b16 %v605
    %v895 = vunpack.c.h.b16 %v605
    %v896 = vunpack.c.l.b16 %v606
    %v897 = vunpack.c.l.b16 %v607
    %v898 = vunpack.c.h.b16 %v607
    %v899 = vunpack.c.l.b16 %v608
    %v900 = vunpack.c.l.b16 %v609
    %v901 = vunpack.c.h.b16 %v609
    %v902 = vunpack.c.l.b16 %v610
    %v903 = vunpack.c.l.b16 %v611
    %v904 = vunpack.c.h.b16 %v611
    %v905 = vunpack.c.l.b16 %v612
    %v906 = vunpack.c.l.b16 %v613
    %v907 = vunpack.c.h.b16 %v613
    %v908 = vunpack.c.l.b16 %v614
    %v909 = vunpack.c.l.b16 %v615
    %v910 = vunpack.c.h.b16 %v615
    %v911 = vunpack.c.l.b16 %v616
    %v912 = vunpack.c.l.b16 %v617
    %v913 = vunpack.c.h.b16 %v617
    %v914 = vunpack.c.l.b16 %v618
    %v915 = vunpack.c.l.b16 %v619
    %v916 = vunpack.c.h.b16 %v619
    %v917 = vunpack.c.l.b16 %v620
    %v918 = vunpack.c.l.b16 %v621
    %v919 = vunpack.c.h.b16 %v621
    %v920 = vunpack.c.l.b16 %v622
    %v921 = vunpack.c.l.b16 %v623
    %v922 = vunpack.c.h.b16 %v623
    %v923 = vunpack.c.l.b16 %v624
    %v924 = vunpack.c.l.b16 %v625
    %v925 = vunpack.c.h.b16 %v625
    %v926 = vunpack.c.l.b16 %v626
    %v927 = vunpack.c.l.b16 %v627
    %v928 = vunpack.c.h.b16 %v627
    %v929 = vunpack.c.l.b16 %v628
    %v930 = vunpack.c.l.b16 %v629
    %v931 = vunpack.c.h.b16 %v629
    %v932 = vunpack.c.l.b16 %v630
    %v933 = vunpack.c.l.b16 %v631
    %v934 = vunpack.c.h.b16 %v631
    %v935 = vunpack.c.l.b16 %v632
    %v936 = vunpack.c.l.b16 %v633
    %v937 = vunpack.c.h.b16 %v633
    %v938 = vunpack.c.l.b16 %v634
    %v939 = vunpack.c.l.b16 %v635
    %v940 = vunpack.c.h.b16 %v635
    %v941 = vunpack.c.l.b16 %v636
    %v942 = vunpack.c.l.b16 %v637
    %v943 = vunpack.c.h.b16 %v637
    %v944 = vunpack.c.l.b16 %v638
    %v945 = vunpack.c.l.b16 %v639
    %v946 = vunpack.c.h.b16 %v639
    %v947 = vunpack.c.l.b16 %v640
    %v948 = vunpack.c.l.b16 %v641
    %v949 = vunpack.c.h.b16 %v641
    %v950 = vunpack.c.l.b16 %v642
    %v951 = vunpack.c.l.b16 %v643
    %v952 = vunpack.c.h.b16 %v643
    %v953 = vunpack.c.l.b16 %v644
    %v954 = vunpack.c.l.b16 %v645
    %v955 = vunpack.c.h.b16 %v645
    %v956 = vunpack.c.l.b16 %v646
    %v957 = vunpack.c.l.b16 %v647
    %v958 = vunpack.c.h.b16 %v647
    %v959 = vunpack.c.l.b16 %v648
    %v960 = vunpack.c.l.b16 %v649
    %v961 = vunpack.c.h.b16 %v649
    %v962 = vunpack.c.l.b16 %v650
    %v963 = vunpack.c.l.b16 %v651
    %v964 = vunpack.c.h.b16 %v651
    %v965 = vunpack.c.l.b16 %v652
    %v966 = vunpack.c.l.b16 %v653
    %v967 = vunpack.c.h.b16 %v653
    %v968 = vunpack.c.l.b16 %v654
    %v969 = vunpack.c.l.b16 %v655
    %v970 = vunpack.c.h.b16 %v655
    %v971 = vunpack.c.l.b16 %v656
    %v972 = vunpack.c.l.b16 %v657
    %v973 = vunpack.c.h.b16 %v657
    %v974 = vunpack.c.l.b16 %v658
    %v975 = vunpack.c.l.b16 %v659
    %v976 = vunpack.c.h.b16 %v659
    %v977 = vunpack.c.l.b16 %v660
    %v978 = vunpack.c.l.b16 %v661
    %v979 = vunpack.c.h.b16 %v661
    %v980 = vunpack.c.l.b16 %v662
    %v981 = vunpack.c.l.b16 %v663
    %v982 = vunpack.c.h.b16 %v663
    %v983 = vunpack.c.l.b16 %v664
    %v984 = vunpack.c.l.b16 %v665
    %v985 = vunpack.c.h.b16 %v665
    %v986 = vunpack.c.l.b16 %v666
    %v987 = vunpack.c.l.b16 %v667
    %v988 = vunpack.c.h.b16 %v667
    %v989 = vunpack.c.l.b16 %v668
    %v990 = vunpack.c.l.b16 %v669
    %v991 = vunpack.c.h.b16 %v669
    %v992 = vunpack.c.l.b16 %v670
    %v993 = vunpack.c.l.b16 %v671
    %v994 = vunpack.c.h.b16 %v671
    %v995 = vunpack.c.l.b16 %v672
    %v996 = vunpack.c.l.b16 %v673
    %v997 = vunpack.c.h.b16 %v673
    %v998 = vunpack.c.l.b16 %v674
    %v999 = vunpack.c.l.b16 %v675
    %v1000 = vunpack.c.h.b16 %v675
    %v1001 = vunpack.c.l.b16 %v676
    %v1002 = vunpack.c.l.b16 %v677
    %v1003 = vunpack.c.h.b16 %v677
    %v1004 = vunpack.c.l.b16 %v678
    %v1005 = vunpack.c.l.b16 %v679
    %v1006 = vunpack.c.h.b16 %v679
    %v1007 = vunpack.c.l.b16 %v680
    %v1008 = vunpack.c.l.b16 %v681
    %v1009 = vunpack.c.h.b16 %v681
    %v1010 = vunpack.c.l.b16 %v682
    %v1011 = vunpack.c.l.b16 %v683
    %v1012 = vunpack.c.h.b16 %v683
    %v1013 = vunpack.c.l.b16 %v684
    %v1014 = vunpack.c.l.b16 %v685
    %v1015 = vunpack.c.h.b16 %v685
    %v1016 = vunpack.c.l.b16 %v686
    %v1017 = vunpack.c.l.b16 %v687
    %v1018 = vunpack.c.h.b16 %v687
    %v1019 = vunpack.c.l.b16 %v688
    %v1020 = vunpack.c.l.b16 %v689
    %v1021 = vunpack.c.h.b16 %v689
    %v1022 = vunpack.c.l.b16 %v690
    %v1023 = vunpack.c.l.b16 %v691
    %v1024 = vunpack.c.h.b16 %v691
    %v1025 = vunpack.c.l.b16 %v692
    %v1026 = vunpack.c.l.b16 %v693
    %v1027 = vunpack.c.h.b16 %v693
    %v1028 = vunpack.c.l.b16 %v694
    %v1029 = vunpack.c.l.b16 %v695
    %v1030 = vunpack.c.h.b16 %v695
    %v1031 = vunpack.c.l.b16 %v696
    %v1032 = vunpack.c.l.b16 %v697
    %v1033 = vunpack.c.h.b16 %v697
    %v1034 = vunpack.c.l.b16 %v698
    %v1035 = vunpack.c.l.b16 %v699
    %v1036 = vunpack.c.h.b16 %v699
    %v1037 = vunpack.c.l.b16 %v700
    %v1038 = vpack.c.b16 %v849, %v846
    %v1039 = vpack.c.b16 %v850, %v847
    %v1040 = vpack.c.b16 %v851, %v848
    %v1041 = vpack.c.b16 %v855, %v852
    %v1042 = vpack.c.b16 %v856, %v853
    %v1043 = vpack.c.b16 %v857, %v854
    %v1044 = vpack.c.b16 %v861, %v858
    %v1045 = vpack.c.b16 %v862, %v859
    %v1046 = vpack.c.b16 %v863, %v860
    %v1047 = vpack.c.b16 %v867, %v864
    %v1048 = vpack.c.b16 %v868, %v865
    %v1049 = vpack.c.b16 %v869, %v866
    %v1050 = vpack.c.b16 %v873, %v870
    %v1051 = vpack.c.b16 %v874, %v871
    %v1052 = vpack.c.b16 %v875, %v872
    %v1053 = vpack.c.b16 %v879, %v876
    %v1054 = vpack.c.b16 %v880, %v877
    %v1055 = vpack.c.b16 %v881, %v878
    %v1056 = vpack.c.b16 %v885, %v882
    %v1057 = vpack.c.b16 %v886, %v883
    %v1058 = vpack.c.b16 %v887, %v884
    %v1059 = vpack.c.b16 %v891, %v888
    %v1060 = vpack.c.b16 %v892, %v889
    %v1061 = vpack.c.b16 %v893, %v890
    %v1062 = vpack.c.b16 %v897, %v894
    %v1063 = vpack.c.b16 %v898, %v895
    %v1064 = vpack.c.b16 %v899, %v896
    %v1065 = vpack.c.b16 %v903, %v900
    %v1066 = vpack.c.b16 %v904, %v901
    %v1067 = vpack.c.b16 %v905, %v902
    %v1068 = vpack.c.b16 %v909, %v906
    %v1069 = vpack.c.b16 %v910, %v907
    %v1070 = vpack.c.b16 %v911, %v908
    %v1071 = vpack.c.b16 %v915, %v912
    %v1072 = vpack.c.b16 %v916, %v913
    %v1073 = vpack.c.b16 %v917, %v914
    %v1074 = vpack.c.b16 %v921, %v918
    %v1075 = vpack.c.b16 %v922, %v919
    %v1076 = vpack.c.b16 %v923, %v920
    %v1077 = vpack.c.b16 %v927, %v924
    %v1078 = vpack.c.b16 %v928, %v925
    %v1079 = vpack.c.b16 %v929, %v926
    %v1080 = vpack.c.b16 %v933, %v930
    %v1081 = vpack.c.b16 %v934, %v931
    %v1082 = vpack.c.b16 %v935, %v932
    %v1083 = vpack.c.b16 %v939, %v936
    %v1084 = vpack.c.b16 %v940, %v937
    %v1085 = vpack.c.b16 %v941, %v938
    %v1086 = vpack.c.b16 %v945, %v942
    %v1087 = vpack.c.b16 %v946, %v943
    %v1088 = vpack.c.b16 %v947, %v944
    %v1089 = vpack.c.b16 %v951, %v948
    %v1090 = vpack.c.b16 %v952, %v949
    %v1091 = vpack.c.b16 %v953, %v950
    %v1092 = vpack.c.b16 %v957, %v954
    %v1093 = vpack.c.b16 %v958, %v955
    %v1094 = vpack.c.b16 %v959, %v956
    %v1095 = vpack.c.b16 %v963, %v960
    %v1096 = vpack.c.b16 %v964, %v961
    %v1097 = vpack.c.b16 %v965, %v962
    %v1098 = vpack.c.b16 %v969, %v966
    %v1099 = vpack.c.b16 %v970, %v967
    %v1100 = vpack.c.b16 %v971, %v968
    %v1101 = vpack.c.b16 %v975, %v972
    %v1102 = vpack.c.b16 %v976, %v973
    %v1103 = vpack.c.b16 %v977, %v974
    %v1104 = vpack.c.b16 %v981, %v978
    %v1105 = vpack.c.b16 %v982, %v979
    %v1106 = vpack.c.b16 %v983, %v980
    %v1107 = vpack.c.b16 %v987, %v984
    %v1108 = vpack.c.b16 %v988, %v985
    %v1109 = vpack.c.b16 %v989, %v986
    %v1110 = vpack.c.b16 %v993, %v990
    %v1111 = vpack.c.b16 %v994, %v991
    %v1112 = vpack.c.b16 %v995, %v992
    %v1113 = vpack.c.b16 %v999, %v996
    %v1114 = vpack.c.b16 %v1000, %v997
    %v1115 = vpack.c.b16 %v1001, %v998
    %v1116 = vpack.c.b16 %v1005, %v1002
    %v1117 = vpack.c.b16 %v1006, %v1003
    %v1118 = vpack.c.b16 %v1007, %v1004
    %v1119 = vpack.c.b16 %v1011, %v1008
    %v1120 = vpack.c.b16 %v1012, %v1009
    %v1121 = vpack.c.b16 %v1013, %v1010
    %v1122 = vpack.c.b16 %v1017, %v1014
    %v1123 = vpack.c.b16 %v1018, %v1015
    %v1124 = vpack.c.b16 %v1019, %v1016
    %v1125 = vpack.c.b16 %v1023, %v1020
    %v1126 = vpack.c.b16 %v1024, %v1021
    %v1127 = vpack.c.b16 %v1025, %v1022
    %v1128 = vpack.c.b16 %v1029, %v1026
    %v1129 = vpack.c.b16 %v1030, %v1027
    %v1130 = vpack.c.b16 %v1031, %v1028
    %v1131 = vpack.c.b16 %v1035, %v1032
    %v1132 = vpack.c.b16 %v1036, %v1033
    %v1133 = vpack.c.b16 %v1037, %v1034
    %1230 = vmatprep.subr.bf16.mxu0 %v1039
    %1231 = vmatpush1.bf16.msra.mxu0 %v1038
    %1232 = vmatprep.subr.bf16.mxu0 %v1042
    %1233 = vmatpush1.bf16.msra.mxu0 %v1041
    %1234 = vmatprep.subr.bf16.mxu0 %v1045
    %1235 = vmatpush1.bf16.msra.mxu0 %v1044
    %1236 = vmatprep.subr.bf16.mxu0 %v1048
    %1237 = vmatpush1.bf16.msra.mxu0 %v1047
    %1238 = vmatprep.subr.bf16.mxu0 %v1051
    %1239 = vmatpush1.bf16.msra.mxu0 %v1050
    %1240 = vmatprep.subr.bf16.mxu0 %v1054
    %1241 = vmatpush1.bf16.msra.mxu0 %v1053
    %1242 = vmatprep.subr.bf16.mxu0 %v1057
    %1243 = vmatpush1.bf16.msra.mxu0 %v1056
    %1244 = vmatprep.subr.bf16.mxu0 %v1060
    %1245 = vmatpush1.bf16.msra.mxu0 %v1059
    %1246 = vmatprep.subr.bf16.mxu0 %v1063
    %1247 = vmatpush1.bf16.msra.mxu0 %v1062
    %1248 = vmatprep.subr.bf16.mxu0 %v1066
    %1249 = vmatpush1.bf16.msra.mxu0 %v1065
    %1250 = vmatprep.subr.bf16.mxu0 %v1069
    %1251 = vmatpush1.bf16.msra.mxu0 %v1068
    %1252 = vmatprep.subr.bf16.mxu0 %v1072
    %1253 = vmatpush1.bf16.msra.mxu0 %v1071
    %1254 = vmatprep.subr.bf16.mxu0 %v1075
    %1255 = vmatpush1.bf16.msra.mxu0 %v1074
    %1256 = vmatprep.subr.bf16.mxu0 %v1078
    %1257 = vmatpush1.bf16.msra.mxu0 %v1077
    %1258 = vmatprep.subr.bf16.mxu0 %v1081
    %1259 = vmatpush1.bf16.msra.mxu0 %v1080
    %1260 = vmatprep.subr.bf16.mxu0 %v1084
    %1261 = vmatpush1.bf16.msra.mxu0 %v1083
    %1262 = vmatprep.mubr.bf16.mxu0 %v570
    %1263 = vmatmul.mubr.bf16.gmra.mrb[0].mxu0 %v569
    %v1264 = vpop.f32.mrb[0].mxu0
    %v1265 = vadd.f32 %v706, %v1264
    %v1266 = vpop.f32.mrb[0].mxu0
    %v1267 = vadd.f32 %v710, %v1266
    %v1268 = vpop.f32.mrb[0].mxu0
    %v1269 = vpop.f32.mrb[0].mxu0
    %1270 = vdwg.mxu0
    %1271 = vmatprep.subr.bf16.mxu0 %v1087
    %1272 = vmatpush1.bf16.msra.mxu0 %v1086
    %1273 = vmatprep.subr.bf16.mxu0 %v1090
    %1274 = vmatpush1.bf16.msra.mxu0 %v1089
    %1275 = vmatprep.subr.bf16.mxu0 %v1093
    %1276 = vmatpush1.bf16.msra.mxu0 %v1092
    %1277 = vmatprep.subr.bf16.mxu0 %v1096
    %1278 = vmatpush1.bf16.msra.mxu0 %v1095
    %1279 = vmatprep.subr.bf16.mxu0 %v1099
    %1280 = vmatpush1.bf16.msra.mxu0 %v1098
    %1281 = vmatprep.subr.bf16.mxu0 %v1102
    %1282 = vmatpush1.bf16.msra.mxu0 %v1101
    %1283 = vmatprep.subr.bf16.mxu0 %v1105
    %1284 = vmatpush1.bf16.msra.mxu0 %v1104
    %1285 = vmatprep.subr.bf16.mxu0 %v1108
    %1286 = vmatpush1.bf16.msra.mxu0 %v1107
    %1287 = vmatprep.subr.bf16.mxu0 %v1111
    %1288 = vmatpush1.bf16.msra.mxu0 %v1110
    %1289 = vmatprep.subr.bf16.mxu0 %v1114
    %1290 = vmatpush1.bf16.msra.mxu0 %v1113
    %1291 = vmatprep.subr.bf16.mxu0 %v1117
    %1292 = vmatpush1.bf16.msra.mxu0 %v1116
    %1293 = vmatprep.subr.bf16.mxu0 %v1120
    %1294 = vmatpush1.bf16.msra.mxu0 %v1119
    %1295 = vmatprep.subr.bf16.mxu0 %v1123
    %1296 = vmatpush1.bf16.msra.mxu0 %v1122
    %1297 = vmatprep.subr.bf16.mxu0 %v1126
    %1298 = vmatpush1.bf16.msra.mxu0 %v1125
    %1299 = vmatprep.subr.bf16.mxu0 %v1129
    %1300 = vmatpush1.bf16.msra.mxu0 %v1128
    %1301 = vmatprep.subr.bf16.mxu0 %v1132
    %1302 = vmatpush1.bf16.msra.mxu0 %v1131
    %1303 = vmatprep.mubr.bf16.mxu0 %v572
    %1304 = vmatmul.mubr.bf16.gmra.mrb[0].mxu0 %v571
    %v1305 = vpop.f32.mrb[0].mxu0
    %v1306 = vadd.f32 %v1265, %v1305
    %v1307 = vpop.f32.mrb[0].mxu0
    %v1308 = vadd.f32 %v1267, %v1307
    %v1309 = vpop.f32.mrb[0].mxu0
    %v1310 = vpop.f32.mrb[0].mxu0
    %1311 = vdwg.mxu0
    %1312 = vmatprep.subr.bf16.mxu0 0
    %1313 = vmatpush1.bf16.msra.mxu0 %v1040
    %1314 = vmatprep.subr.bf16.mxu0 0
    %1315 = vmatpush1.bf16.msra.mxu0 %v1043
    %1316 = vmatprep.subr.bf16.mxu0 0
    %1317 = vmatpush1.bf16.msra.mxu0 %v1046
    %1318 = vmatprep.subr.bf16.mxu0 0
    %1319 = vmatpush1.bf16.msra.mxu0 %v1049
    %1320 = vmatprep.subr.bf16.mxu0 0
    %1321 = vmatpush1.bf16.msra.mxu0 %v1052
    %1322 = vmatprep.subr.bf16.mxu0 0
    %1323 = vmatpush1.bf16.msra.mxu0 %v1055
    %1324 = vmatprep.subr.bf16.mxu0 0
    %1325 = vmatpush1.bf16.msra.mxu0 %v1058
    %1326 = vmatprep.subr.bf16.mxu0 0
    %1327 = vmatpush1.bf16.msra.mxu0 %v1061
    %1328 = vmatprep.subr.bf16.mxu0 0
    %1329 = vmatpush1.bf16.msra.mxu0 %v1064
    %1330 = vmatprep.subr.bf16.mxu0 0
    %1331 = vmatpush1.bf16.msra.mxu0 %v1067
    %1332 = vmatprep.subr.bf16.mxu0 0
    %1333 = vmatpush1.bf16.msra.mxu0 %v1070
    %1334 = vmatprep.subr.bf16.mxu0 0
    %1335 = vmatpush1.bf16.msra.mxu0 %v1073
    %1336 = vmatprep.subr.bf16.mxu0 0
    %1337 = vmatpush1.bf16.msra.mxu0 %v1076
    %1338 = vmatprep.subr.bf16.mxu0 0
    %1339 = vmatpush1.bf16.msra.mxu0 %v1079
    %1340 = vmatprep.subr.bf16.mxu0 0
    %1341 = vmatpush1.bf16.msra.mxu0 %v1082
    %1342 = vmatprep.subr.bf16.mxu0 0
    %1343 = vmatpush1.bf16.msra.mxu0 %v1085
    %1344 = vmatprep.mubr.bf16.mxu0 %v570
    %1345 = vmatmul.mubr.bf16.gmra.mrb[0].mxu0 %v569
    %v1346 = vpop.f32.mrb[0].mxu0
    %v1347 = vadd.f32 %v714, %v1346
    %v1348 = vpop.f32.mrb[0].mxu0
    %v1349 = vpop.f32.mrb[0].mxu0
    %v1350 = vpop.f32.mrb[0].mxu0
    %1351 = vdwg.mxu0
    %1352 = vmatprep.subr.bf16.mxu0 0
    %1353 = vmatpush1.bf16.msra.mxu0 %v1088
    %1354 = vmatprep.subr.bf16.mxu0 0
    %1355 = vmatpush1.bf16.msra.mxu0 %v1091
    %1356 = vmatprep.subr.bf16.mxu0 0
    %1357 = vmatpush1.bf16.msra.mxu0 %v1094
    %1358 = vmatprep.subr.bf16.mxu0 0
    %1359 = vmatpush1.bf16.msra.mxu0 %v1097
    %1360 = vmatprep.subr.bf16.mxu0 0
    %1361 = vmatpush1.bf16.msra.mxu0 %v1100
    %1362 = vmatprep.subr.bf16.mxu0 0
    %1363 = vmatpush1.bf16.msra.mxu0 %v1103
    %1364 = vmatprep.subr.bf16.mxu0 0
    %1365 = vmatpush1.bf16.msra.mxu0 %v1106
    %1366 = vmatprep.subr.bf16.mxu0 0
    %1367 = vmatpush1.bf16.msra.mxu0 %v1109
    %1368 = vmatprep.subr.bf16.mxu0 0
    %1369 = vmatpush1.bf16.msra.mxu0 %v1112
    %1370 = vmatprep.subr.bf16.mxu0 0
    %1371 = vmatpush1.bf16.msra.mxu0 %v1115
    %1372 = vmatprep.subr.bf16.mxu0 0
    %1373 = vmatpush1.bf16.msra.mxu0 %v1118
    %1374 = vmatprep.subr.bf16.mxu0 0
    %1375 = vmatpush1.bf16.msra.mxu0 %v1121
    %1376 = vmatprep.subr.bf16.mxu0 0
    %1377 = vmatpush1.bf16.msra.mxu0 %v1124
    %1378 = vmatprep.subr.bf16.mxu0 0
    %1379 = vmatpush1.bf16.msra.mxu0 %v1127
    %1380 = vmatprep.subr.bf16.mxu0 0
    %1381 = vmatpush1.bf16.msra.mxu0 %v1130
    %1382 = vmatprep.subr.bf16.mxu0 0
    %1383 = vmatpush1.bf16.msra.mxu0 %v1133
    %1384 = vmatprep.mubr.bf16.mxu0 %v572
    %1385 = vmatmul.mubr.bf16.gmra.mrb[0].mxu0 %v571
    %v1386 = vpop.f32.mrb[0].mxu0
    %v1387 = vadd.f32 %v1347, %v1386
    %v1388 = vpop.f32.mrb[0].mxu0
    %v1389 = vpop.f32.mrb[0].mxu0
    %v1390 = vpop.f32.mrb[0].mxu0
    %1391 = vdwg.mxu0
    %v1392 = vmax.f32 %v1306, 0.0
    %v1393 = vmax.f32 %v1308, 0.0
    %v1394 = vmax.f32 %v1387, 0.0
    %v1395 = vpack.c.bf16 %v1392, %v1392
    %v1396 = vpack.c.bf16 %v1393, %v1393
    %v1397 = vpack.c.bf16 %v1394, %v1394
    %v1398 = vld [vmem:[#allocation7] sm:$0xff]
    %v1399 = vld [vmem:[#allocation7 + $0x8] sm:$0xff]
    %v1400 = vld [vmem:[#allocation7 + $0x10] sm:$0xff]
    %v1401 = vld [vmem:[#allocation7 + $0x18] sm:$0xff]
    %v1402 = vld [vmem:[#allocation7 + $0x20] sm:$0xff]
    %v1403 = vld [vmem:[#allocation7 + $0x28] sm:$0xff]
    %v1404 = vld [vmem:[#allocation7 + $0x30] sm:$0xff]
    %v1405 = vld [vmem:[#allocation7 + $0x38] sm:$0xff]
    %v1406 = vld [vmem:[#allocation7 + $0x40] sm:$0xff]
    %v1407 = vld [vmem:[#allocation7 + $0x48] sm:$0xff]
    %v1408 = vld [vmem:[#allocation7 + $0x50] sm:$0xff]
    %v1409 = vld [vmem:[#allocation7 + $0x58] sm:$0xff]
    %v1410 = vld [vmem:[#allocation7 + $0x60] sm:$0xff]
    %v1411 = vld [vmem:[#allocation7 + $0x68] sm:$0xff]
    %v1412 = vld [vmem:[#allocation7 + $0x70] sm:$0xff]
    %v1413 = vld [vmem:[#allocation7 + $0x78] sm:$0xff]
    %v1414 = vld [vmem:[#allocation7 + $0x80] sm:$0xff]
    %v1415 = vld [vmem:[#allocation7 + $0x88] sm:$0xff]
    %v1416 = vld [vmem:[#allocation7 + $0x90] sm:$0xff]
    %v1417 = vld [vmem:[#allocation7 + $0x98] sm:$0xff]
    %v1418 = vld [vmem:[#allocation7 + $0xa0] sm:$0xff]
    %v1419 = vld [vmem:[#allocation7 + $0xa8] sm:$0xff]
    %v1420 = vld [vmem:[#allocation7 + $0xb0] sm:$0xff]
    %v1421 = vld [vmem:[#allocation7 + $0xb8] sm:$0xff]
    %v1422 = vld [vmem:[#allocation7 + $0xc0] sm:$0xff]
    %v1423 = vld [vmem:[#allocation7 + $0xc8] sm:$0xff]
    %v1424 = vld [vmem:[#allocation7 + $0xd0] sm:$0xff]
    %v1425 = vld [vmem:[#allocation7 + $0xd8] sm:$0xff]
    %v1426 = vld [vmem:[#allocation7 + $0xe0] sm:$0xff]
    %v1427 = vld [vmem:[#allocation7 + $0xe8] sm:$0xff]
    %v1428 = vld [vmem:[#allocation7 + $0xf0] sm:$0xff]
    %v1429 = vld [vmem:[#allocation7 + $0xf8] sm:$0xff]
    %v1430 = vld [vmem:[#allocation7 + $0x100] sm:$0xff]
    %v1431 = vld [vmem:[#allocation7 + $0x108] sm:$0xff]
    %v1432 = vld [vmem:[#allocation7 + $0x110] sm:$0xff]
    %v1433 = vld [vmem:[#allocation7 + $0x118] sm:$0xff]
    %v1434 = vld [vmem:[#allocation7 + $0x120] sm:$0xff]
    %v1435 = vld [vmem:[#allocation7 + $0x128] sm:$0xff]
    %v1436 = vld [vmem:[#allocation7 + $0x130] sm:$0xff]
    %v1437 = vld [vmem:[#allocation7 + $0x138] sm:$0xff]
    %v1438 = vld [vmem:[#allocation7 + $0x140] sm:$0xff]
    %v1439 = vld [vmem:[#allocation7 + $0x148] sm:$0xff]
    %v1440 = vld [vmem:[#allocation7 + $0x150] sm:$0xff]
    %v1441 = vld [vmem:[#allocation7 + $0x158] sm:$0xff]
    %v1442 = vld [vmem:[#allocation7 + $0x160] sm:$0xff]
    %v1443 = vld [vmem:[#allocation7 + $0x168] sm:$0xff]
    %v1444 = vld [vmem:[#allocation7 + $0x170] sm:$0xff]
    %v1445 = vld [vmem:[#allocation7 + $0x178] sm:$0xff]
    %v1446 = vld [vmem:[%s6] sm:$0x3]
    %v1448 = vlaneseq
    %v1449 = vshrl.u32 %v1448, 7
    %v1450 = vsub.s32 0, %v1449
    %v1451 = vrot.slane %v1446, %v1450
    %v1452 = vlaneseq
    %v1453 = vshrl.u32 %v1452, 7
    %v1454 = vsub.s32 1, %v1453
    %v1455 = vrot.slane %v1446, %v1454
    %v1506 = vunpack.c.l.b16 %v1398
    %v1507 = vunpack.c.h.b16 %v1398
    %v1508 = vunpack.c.l.b16 %v1399
    %v1509 = vunpack.c.h.b16 %v1399
    %v1510 = vunpack.c.l.b16 %v1400
    %v1511 = vunpack.c.h.b16 %v1400
    %v1512 = vunpack.c.l.b16 %v1401
    %v1513 = vunpack.c.h.b16 %v1401
    %v1514 = vunpack.c.l.b16 %v1402
    %v1515 = vunpack.c.h.b16 %v1402
    %v1516 = vunpack.c.l.b16 %v1403
    %v1517 = vunpack.c.h.b16 %v1403
    %v1518 = vunpack.c.l.b16 %v1404
    %v1519 = vunpack.c.h.b16 %v1404
    %v1520 = vunpack.c.l.b16 %v1405
    %v1521 = vunpack.c.h.b16 %v1405
    %v1522 = vunpack.c.l.b16 %v1406
    %v1523 = vunpack.c.h.b16 %v1406
    %v1524 = vunpack.c.l.b16 %v1407
    %v1525 = vunpack.c.h.b16 %v1407
    %v1526 = vunpack.c.l.b16 %v1408
    %v1527 = vunpack.c.h.b16 %v1408
    %v1528 = vunpack.c.l.b16 %v1409
    %v1529 = vunpack.c.h.b16 %v1409
    %v1530 = vunpack.c.l.b16 %v1410
    %v1531 = vunpack.c.h.b16 %v1410
    %v1532 = vunpack.c.l.b16 %v1411
    %v1533 = vunpack.c.h.b16 %v1411
    %v1534 = vunpack.c.l.b16 %v1412
    %v1535 = vunpack.c.h.b16 %v1412
    %v1536 = vunpack.c.l.b16 %v1413
    %v1537 = vunpack.c.h.b16 %v1413
    %v1538 = vunpack.c.l.b16 %v1414
    %v1539 = vunpack.c.h.b16 %v1414
    %v1540 = vunpack.c.l.b16 %v1415
    %v1541 = vunpack.c.h.b16 %v1415
    %v1542 = vunpack.c.l.b16 %v1416
    %v1543 = vunpack.c.h.b16 %v1416
    %v1544 = vunpack.c.l.b16 %v1417
    %v1545 = vunpack.c.h.b16 %v1417
    %v1546 = vunpack.c.l.b16 %v1418
    %v1547 = vunpack.c.h.b16 %v1418
    %v1548 = vunpack.c.l.b16 %v1419
    %v1549 = vunpack.c.h.b16 %v1419
    %v1550 = vunpack.c.l.b16 %v1420
    %v1551 = vunpack.c.h.b16 %v1420
    %v1552 = vunpack.c.l.b16 %v1421
    %v1553 = vunpack.c.h.b16 %v1421
    %v1554 = vunpack.c.l.b16 %v1422
    %v1555 = vunpack.c.h.b16 %v1422
    %v1556 = vunpack.c.l.b16 %v1423
    %v1557 = vunpack.c.h.b16 %v1423
    %v1558 = vunpack.c.l.b16 %v1424
    %v1559 = vunpack.c.h.b16 %v1424
    %v1560 = vunpack.c.l.b16 %v1425
    %v1561 = vunpack.c.h.b16 %v1425
    %v1562 = vunpack.c.l.b16 %v1426
    %v1563 = vunpack.c.h.b16 %v1426
    %v1564 = vunpack.c.l.b16 %v1427
    %v1565 = vunpack.c.h.b16 %v1427
    %v1566 = vunpack.c.l.b16 %v1428
    %v1567 = vunpack.c.h.b16 %v1428
    %v1568 = vunpack.c.l.b16 %v1429
    %v1569 = vunpack.c.h.b16 %v1429
    %v1570 = vunpack.c.l.b16 %v1430
    %v1571 = vunpack.c.h.b16 %v1430
    %v1572 = vunpack.c.l.b16 %v1431
    %v1573 = vunpack.c.h.b16 %v1431
    %v1574 = vunpack.c.l.b16 %v1432
    %v1575 = vunpack.c.h.b16 %v1432
    %v1576 = vunpack.c.l.b16 %v1433
    %v1577 = vunpack.c.h.b16 %v1433
    %v1578 = vunpack.c.l.b16 %v1434
    %v1579 = vunpack.c.h.b16 %v1434
    %v1580 = vunpack.c.l.b16 %v1435
    %v1581 = vunpack.c.h.b16 %v1435
    %v1582 = vunpack.c.l.b16 %v1436
    %v1583 = vunpack.c.h.b16 %v1436
    %v1584 = vunpack.c.l.b16 %v1437
    %v1585 = vunpack.c.h.b16 %v1437
    %v1586 = vunpack.c.l.b16 %v1438
    %v1587 = vunpack.c.h.b16 %v1438
    %v1588 = vunpack.c.l.b16 %v1439
    %v1589 = vunpack.c.h.b16 %v1439
    %v1590 = vunpack.c.l.b16 %v1440
    %v1591 = vunpack.c.h.b16 %v1440
    %v1592 = vunpack.c.l.b16 %v1441
    %v1593 = vunpack.c.h.b16 %v1441
    %v1594 = vunpack.c.l.b16 %v1442
    %v1595 = vunpack.c.h.b16 %v1442
    %v1596 = vunpack.c.l.b16 %v1443
    %v1597 = vunpack.c.h.b16 %v1443
    %v1598 = vunpack.c.l.b16 %v1444
    %v1599 = vunpack.c.h.b16 %v1444
    %v1600 = vunpack.c.l.b16 %v1445
    %v1601 = vunpack.c.h.b16 %v1445
    %v1602 = vpack.c.b16 %v1508, %v1506
    %v1603 = vpack.c.b16 %v1509, %v1507
    %v1604 = vpack.c.b16 %v1512, %v1510
    %v1605 = vpack.c.b16 %v1513, %v1511
    %v1606 = vpack.c.b16 %v1516, %v1514
    %v1607 = vpack.c.b16 %v1517, %v1515
    %v1608 = vpack.c.b16 %v1520, %v1518
    %v1609 = vpack.c.b16 %v1521, %v1519
    %v1610 = vpack.c.b16 %v1524, %v1522
    %v1611 = vpack.c.b16 %v1525, %v1523
    %v1612 = vpack.c.b16 %v1528, %v1526
    %v1613 = vpack.c.b16 %v1529, %v1527
    %v1614 = vpack.c.b16 %v1532, %v1530
    %v1615 = vpack.c.b16 %v1533, %v1531
    %v1616 = vpack.c.b16 %v1536, %v1534
    %v1617 = vpack.c.b16 %v1537, %v1535
    %v1618 = vpack.c.b16 %v1540, %v1538
    %v1619 = vpack.c.b16 %v1541, %v1539
    %v1620 = vpack.c.b16 %v1544, %v1542
    %v1621 = vpack.c.b16 %v1545, %v1543
    %v1622 = vpack.c.b16 %v1548, %v1546
    %v1623 = vpack.c.b16 %v1549, %v1547
    %v1624 = vpack.c.b16 %v1552, %v1550
    %v1625 = vpack.c.b16 %v1553, %v1551
    %v1626 = vpack.c.b16 %v1556, %v1554
    %v1627 = vpack.c.b16 %v1557, %v1555
    %v1628 = vpack.c.b16 %v1560, %v1558
    %v1629 = vpack.c.b16 %v1561, %v1559
    %v1630 = vpack.c.b16 %v1564, %v1562
    %v1631 = vpack.c.b16 %v1565, %v1563
    %v1632 = vpack.c.b16 %v1568, %v1566
    %v1633 = vpack.c.b16 %v1569, %v1567
    %v1634 = vpack.c.b16 %v1572, %v1570
    %v1635 = vpack.c.b16 %v1573, %v1571
    %v1636 = vpack.c.b16 %v1576, %v1574
    %v1637 = vpack.c.b16 %v1577, %v1575
    %v1638 = vpack.c.b16 %v1580, %v1578
    %v1639 = vpack.c.b16 %v1581, %v1579
    %v1640 = vpack.c.b16 %v1584, %v1582
    %v1641 = vpack.c.b16 %v1585, %v1583
    %v1642 = vpack.c.b16 %v1588, %v1586
    %v1643 = vpack.c.b16 %v1589, %v1587
    %v1644 = vpack.c.b16 %v1592, %v1590
    %v1645 = vpack.c.b16 %v1593, %v1591
    %v1646 = vpack.c.b16 %v1596, %v1594
    %v1647 = vpack.c.b16 %v1597, %v1595
    %v1648 = vpack.c.b16 %v1600, %v1598
    %v1649 = vpack.c.b16 %v1601, %v1599
    %1698 = vmatprep.subr.bf16.mxu0 %v1603
    %1699 = vmatpush1.bf16.msra.mxu0 %v1602
    %1700 = vmatprep.subr.bf16.mxu0 %v1605
    %1701 = vmatpush1.bf16.msra.mxu0 %v1604
    %1702 = vmatprep.subr.bf16.mxu0 %v1607
    %1703 = vmatpush1.bf16.msra.mxu0 %v1606
    %1704 = vmatprep.subr.bf16.mxu0 %v1609
    %1705 = vmatpush1.bf16.msra.mxu0 %v1608
    %1706 = vmatprep.subr.bf16.mxu0 %v1611
    %1707 = vmatpush1.bf16.msra.mxu0 %v1610
    %1708 = vmatprep.subr.bf16.mxu0 %v1613
    %1709 = vmatpush1.bf16.msra.mxu0 %v1612
    %1710 = vmatprep.subr.bf16.mxu0 %v1615
    %1711 = vmatpush1.bf16.msra.mxu0 %v1614
    %1712 = vmatprep.subr.bf16.mxu0 %v1617
    %1713 = vmatpush1.bf16.msra.mxu0 %v1616
    %1714 = vmatprep.subr.bf16.mxu0 %v1619
    %1715 = vmatpush1.bf16.msra.mxu0 %v1618
    %1716 = vmatprep.subr.bf16.mxu0 %v1621
    %1717 = vmatpush1.bf16.msra.mxu0 %v1620
    %1718 = vmatprep.subr.bf16.mxu0 %v1623
    %1719 = vmatpush1.bf16.msra.mxu0 %v1622
    %1720 = vmatprep.subr.bf16.mxu0 %v1625
    %1721 = vmatpush1.bf16.msra.mxu0 %v1624
    %1722 = vmatprep.subr.bf16.mxu0 %v1627
    %1723 = vmatpush1.bf16.msra.mxu0 %v1626
    %1724 = vmatprep.subr.bf16.mxu0 %v1629
    %1725 = vmatpush1.bf16.msra.mxu0 %v1628
    %1726 = vmatprep.subr.bf16.mxu0 %v1631
    %1727 = vmatpush1.bf16.msra.mxu0 %v1630
    %1728 = vmatprep.subr.bf16.mxu0 %v1633
    %1729 = vmatpush1.bf16.msra.mxu0 %v1632
    %1730 = vmatprep.mubr.bf16.mxu0 %v1396
    %1731 = vmatmul.mubr.bf16.gmra.mrb[0].mxu0 %v1395
    %v1732 = vpop.f32.mrb[0].mxu0
    %v1733 = vadd.f32 %v1451, %v1732
    %v1734 = vpop.f32.mrb[0].mxu0
    %v1735 = vadd.f32 %v1455, %v1734
    %v1736 = vpop.f32.mrb[0].mxu0
    %v1737 = vpop.f32.mrb[0].mxu0
    %1738 = vdwg.mxu0
    %1739 = vmatprep.subr.bf16.mxu0 %v1635
    %1740 = vmatpush1.bf16.msra.mxu0 %v1634
    %1741 = vmatprep.subr.bf16.mxu0 %v1637
    %1742 = vmatpush1.bf16.msra.mxu0 %v1636
    %1743 = vmatprep.subr.bf16.mxu0 %v1639
    %1744 = vmatpush1.bf16.msra.mxu0 %v1638
    %1745 = vmatprep.subr.bf16.mxu0 %v1641
    %1746 = vmatpush1.bf16.msra.mxu0 %v1640
    %1747 = vmatprep.subr.bf16.mxu0 %v1643
    %1748 = vmatpush1.bf16.msra.mxu0 %v1642
    %1749 = vmatprep.subr.bf16.mxu0 %v1645
    %1750 = vmatpush1.bf16.msra.mxu0 %v1644
    %1751 = vmatprep.subr.bf16.mxu0 %v1647
    %1752 = vmatpush1.bf16.msra.mxu0 %v1646
    %1753 = vmatprep.subr.bf16.mxu0 %v1649
    %1754 = vmatpush1.bf16.msra.mxu0 %v1648
    %1755 = vmatprep.subr.bf16.mxu0 0
    %1756 = vmatpush1.bf16.msra.mxu0 0
    %1757 = vmatprep.subr.bf16.mxu0 0
    %1758 = vmatpush1.bf16.msra.mxu0 0
    %1759 = vmatprep.subr.bf16.mxu0 0
    %1760 = vmatpush1.bf16.msra.mxu0 0
    %1761 = vmatprep.subr.bf16.mxu0 0
    %1762 = vmatpush1.bf16.msra.mxu0 0
    %1763 = vmatprep.subr.bf16.mxu0 0
    %1764 = vmatpush1.bf16.msra.mxu0 0
    %1765 = vmatprep.subr.bf16.mxu0 0
    %1766 = vmatpush1.bf16.msra.mxu0 0
    %1767 = vmatprep.subr.bf16.mxu0 0
    %1768 = vmatpush1.bf16.msra.mxu0 0
    %1769 = vmatprep.subr.bf16.mxu0 0
    %1770 = vmatpush1.bf16.msra.mxu0 0
    %1771 = vmatprep.mubr.bf16.mxu0 0
    %1772 = vmatmul.mubr.bf16.gmra.mrb[0].mxu0 %v1397
    %v1773 = vpop.f32.mrb[0].mxu0
    %v1774 = vadd.f32 %v1733, %v1773
    %v1775 = vpop.f32.mrb[0].mxu0
    %v1776 = vadd.f32 %v1735, %v1775
    %v1777 = vpop.f32.mrb[0].mxu0
    %v1778 = vpop.f32.mrb[0].mxu0
    %1779 = vdwg.mxu0
    %1780 = vst [vmem:[#allocation8] sm:$0xff] %v1774
    %1781 = vst [vmem:[#allocation8 + $0x8] sm:$0xff] %v1776
    // Predicated region
    $region42: #{english_hindi_net_forward.1} parent=1 // pred_check
      _
    $region43: #{english_hindi_net_forward.1} parent=1 // pred_check_branch
      %1783 = sbr.rel (0) target = $region45
    $region44: #{english_hindi_net_forward.1} parent=1 // pred_region
      %s1785 = ssub.s32 256, 256
      %1786 = vsyncadd [#allocation4], %s1785
      %s1788 = sshll.u32 [#allocation8], 4
      %s1789 = int_to_ptr.vmem [resolvable:$true] %s1788
      %1791 = dma.vmem_to_hbm [thread:$0]  %s1789, 256, %s7, [#allocation4]
    $region45: #{english_hindi_net_forward.1} parent=1 // pred_fallthru
      _
    // Predicated region
    $region46: #{english_hindi_net_forward.1} parent=1 // pred_check
      _
    $region47: #{english_hindi_net_forward.1} parent=1 // pred_check_branch
      %1793 = sbr.rel (0) target = $region49
    $region48: #{english_hindi_net_forward.1} parent=1 // pred_region
      %1794 = dma.done [#allocation4], 256
    $region49: #{english_hindi_net_forward.1} parent=1 // pred_fallthru
      _
    %1795 = vsyncpa [#allocation3], 1
    %1796 = vsyncpa [#allocation6], 1
    %1797 = vsyncpa [#allocation4], 1

</llo_original>
